<compile_context>
chip_gen: v6e
topology: v6e:2x2x1
jax: 0.10.0
libtpu: 0.0.40
codegen_flags: <defaults>
</compile_context>

<pallas_src>
import jax
import jax.numpy as jnp
from jax import lax
from jax.experimental import pallas as pl
from jax.experimental.pallas import tpu as pltpu


def bilstm_kernel(x_ref, len_ref,
                  wih_ref, whh_ref, b_ref,
                  wdf_ref, wdb_ref, bd_ref,
                  out_ref,
                  gxf_ref, gxb_ref):
    """One batch-tile of the BiLSTM forward.

    x_ref:    (T, Bb, E)   f32  time-major embeddings (this batch tile, contiguous in HBM)
    len_ref:  (Bb, 1)      i32  valid sequence lengths
    wih_ref:  (E, 8H)      bf16 [Wih_fwd | Wih_bwd] input->gates, gate order i,f,o,g
    whh_ref:  (2H, 8H)     bf16 block-diag(Whh_fwd, Whh_bwd) hidden->gates
    b_ref:    (1, 8H)      f32  [b_fwd | b_bwd], each = b_ih + b_hh
    wdf/wdb:  (1, H)       f32  dense weight rows for fwd / bwd features
    bd_ref:   (1, 1)       f32  dense bias
    out_ref:  (Bb, 1)      f32  logits
    gxf/gxb:  (T, Bb, 4H)  f32  VMEM scratch: precomputed input projections per direction
    """
    T, Bb, E = x_ref.shape
    H = whh_ref.shape[0] // 2
    H4 = 4 * H

    lens = len_ref[...]                                   # (Bb, 1) int32

    # ---- hoisted input projection: one bf16 MXU matmul for all steps & both dirs ----
    x2d = x_ref[...].reshape(T * Bb, E).astype(jnp.bfloat16)
    gx = (jnp.dot(x2d, wih_ref[...], preferred_element_type=jnp.float32)
          + b_ref[...])                                   # (T*Bb, 8H) f32
    gxf_ref[...] = gx[:, 0:H4].reshape(T, Bb, H4)         # 128-lane aligned split
    gxb_ref[...] = gx[:, H4:2 * H4].reshape(T, Bb, H4)

    whh = whh_ref[...]                                    # bf16 (2H, 8H), hoisted

    def gates_to_hc(gates, c):
        # gate order [i, f, o, g]: one contiguous sigmoid over 3H, one tanh over H.
        sg = jax.nn.sigmoid(gates[:, 0:3 * H])
        i_g = sg[:, 0:H]
        f_g = sg[:, H:2 * H]
        o_g = sg[:, 2 * H:3 * H]
        g_g = jnp.tanh(gates[:, 3 * H:4 * H])
        c_new = f_g * c + i_g * g_g
        h_new = o_g * jnp.tanh(c_new)
        return h_new, c_new

    zeros = jnp.zeros((Bb, H), jnp.float32)

    # ---- fused bidirectional recurrence ----
    # One block-diagonal (Bb,2H)x(2H,8H) bf16 matmul per step covers both directions;
    # masked updates (t < lens) reproduce pack_padded_sequence: after the loop h_f is the
    # forward hidden at step lens-1 and h_b the backward hidden at step 0.
    def body(s, carry):
        h_f, c_f, h_b, c_b = carry
        t_b = T - 1 - s

        h_cat = jnp.concatenate([h_f, h_b], axis=1).astype(jnp.bfloat16)   # (Bb, 2H)
        g = jnp.dot(h_cat, whh, preferred_element_type=jnp.float32)        # (Bb, 8H)

        # forward direction, t = s
        g_f = g[:, 0:H4] + gxf_ref[s]
        hf_new, cf_new = gates_to_hc(g_f, c_f)
        v_f = s < lens                                    # (Bb, 1)
        h_f = jnp.where(v_f, hf_new, h_f)
        c_f = jnp.where(v_f, cf_new, c_f)

        # backward direction, t = T - 1 - s
        g_b = g[:, H4:2 * H4] + gxb_ref[t_b]
        hb_new, cb_new = gates_to_hc(g_b, c_b)
        v_b = t_b < lens
        h_b = jnp.where(v_b, hb_new, h_b)
        c_b = jnp.where(v_b, cb_new, c_b)

        return h_f, c_f, h_b, c_b

    # Full unroll only for small static T (VLIW scheduler overlap); partial unroll for
    # long sequences to keep the 64-vreg file from spilling.
    unroll = True if T <= 16 else 8
    h_f, _, h_b, _ = lax.fori_loop(0, T, body, (zeros, zeros, zeros, zeros),
                                   unroll=unroll)

    # ---- final Linear(2H -> 1): elementwise mul + lane reduce (no concat / N=1 matmul) ----
    out = (jnp.sum(h_f * wdf_ref[...], axis=1, keepdims=True)
           + jnp.sum(h_b * wdb_ref[...], axis=1, keepdims=True)
           + bd_ref[...])
    out_ref[...] = out


def bilstm_forward(embeddings, lengths, params, *, block_b=256):
    """embeddings: (B, T, E) float32 (batch_first, like PyTorch); lengths: (B,) int."""
    B, T, E = embeddings.shape
    H = params["whh_f"].shape[0]
    H4 = 4 * H

    def ceil_to(x, m):
        return ((x + m - 1) // m) * m

    # ---- batch tiling: big MXU-sized tile, but >= 2 grid tiles when batch allows (v7x) ----
    B8 = ceil_to(B, 8)
    bb = max(8, min(block_b, B8))
    if B8 // bb < 2 and B8 >= 16:
        bb = ceil_to((B8 + 1) // 2, 8)        # cap tile at ~half the padded batch
    B_pad = ceil_to(B8, bb)
    grid = (B_pad // bb,)

    # ---- host-side weight packing ----
    def reorder(w):  # last dim 4H, PyTorch gate order [i,f,g,o] -> [i,f,o,g]
        return jnp.concatenate([w[..., 0:2 * H], w[..., 3 * H:4 * H], w[..., 2 * H:3 * H]],
                               axis=-1)

    wih_cat = jnp.concatenate([reorder(params["wih_f"]), reorder(params["wih_b"])],
                              axis=1).astype(jnp.bfloat16)                  # (E, 8H)
    b_cat = jnp.concatenate([reorder(params["b_f"]), reorder(params["b_b"])], axis=1)  # (1,8H) f32
    zhh = jnp.zeros((H, H4), jnp.float32)
    whh_blk = jnp.concatenate(
        [jnp.concatenate([reorder(params["whh_f"]), zhh], axis=1),
         jnp.concatenate([zhh, reorder(params["whh_b"])], axis=1)],
        axis=0).astype(jnp.bfloat16)                                        # (2H, 8H)
    wd_f = params["wd"][:H].reshape(1, H)
    wd_b = params["wd"][H:].reshape(1, H)
    bd = params["bd"]

    # ---- x tile layout: (num_tiles, T, bb, E) -> one contiguous HBM slab per grid step,
    # time-major inside the kernel. Padded rows get length 0 (inert).
    x = embeddings.astype(jnp.float32)
    if B_pad != B:
        x = jnp.pad(x, ((0, B_pad - B), (0, 0), (0, 0)))
    x_tiles = x.reshape(B_pad // bb, bb, T, E).transpose(0, 2, 1, 3)
    lens = jnp.pad(lengths.astype(jnp.int32), (0, B_pad - B)).reshape(B_pad, 1)

    # ---- VMEM budget (explicit, with headroom; v7x only has 64 MiB physical) ----
    x_bytes = 2 * T * bb * E * 4                      # x tile, double-buffered
    gx_bytes = 2 * T * bb * H4 * 4                    # gxf + gxb f32 scratch
    w_bytes = 2 * (wih_cat.size * 2 + whh_blk.size * 2
                   + (b_cat.size + wd_f.size + wd_b.size + bd.size) * 4)
    out_bytes = 2 * bb * 4
    vmem_need = x_bytes + gx_bytes + w_bytes + out_bytes
    vmem_limit = int(min(max(2 * vmem_need, 32 * 2 ** 20), 48 * 2 ** 20))

    def full_spec(arr):
        nd = arr.ndim
        return pl.BlockSpec(arr.shape, lambda i, _n=nd: (0,) * _n)

    out = pl.pallas_call(
        bilstm_kernel,
        out_shape=jax.ShapeDtypeStruct((B_pad, 1), jnp.float32),
        grid=grid,
        in_specs=[
            pl.BlockSpec((None, T, bb, E), lambda i: (i, 0, 0, 0)),   # contiguous x tile
            pl.BlockSpec((bb, 1), lambda i: (i, 0)),                  # lengths
            full_spec(wih_cat),
            full_spec(whh_blk),
            full_spec(b_cat),
            full_spec(wd_f),
            full_spec(wd_b),
            full_spec(bd),
        ],
        out_specs=pl.BlockSpec((bb, 1), lambda i: (i, 0)),
        scratch_shapes=[
            pltpu.VMEM((T, bb, H4), jnp.float32),   # precomputed fwd gate inputs
            pltpu.VMEM((T, bb, H4), jnp.float32),   # precomputed bwd gate inputs
        ],
        compiler_params=pltpu.CompilerParams(
            dimension_semantics=("parallel",),      # batch tiles -> both TCs on v7x
            vmem_limit_bytes=vmem_limit),
    )(x_tiles, lens, wih_cat, whh_blk, b_cat, wd_f, wd_b, bd)

    return out[:B, 0]                               # torch.squeeze(out, 1)


# ---------------- pure-JAX reference (for correctness check) ----------------
def bilstm_reference(embeddings, lengths, params):
    B, T, E = embeddings.shape
    H = params["whh_f"].shape[0]
    x = embeddings.astype(jnp.float32)
    lens = lengths.astype(jnp.int32)

    def cell(x_t, h, c, wih, whh, b):
        g = x_t @ wih + h @ whh + b
        i = jax.nn.sigmoid(g[:, 0:H])
        f = jax.nn.sigmoid(g[:, H:2 * H])
        gg = jnp.tanh(g[:, 2 * H:3 * H])
        o = jax.nn.sigmoid(g[:, 3 * H:4 * H])
        c_n = f * c + i * gg
        return o * jnp.tanh(c_n), c_n

    z = jnp.zeros((B, H), jnp.float32)
    h, c, out_fwd = z, z, z
    for t in range(T):
        h_n, c_n = cell(x[:, t], h, c, params["wih_f"], params["whh_f"], params["b_f"])
        valid = (t < lens)[:, None]
        h = jnp.where(valid, h_n, h)
        c = jnp.where(valid, c_n, c)
        out_fwd = jnp.where((t == lens - 1)[:, None], h, out_fwd)
    h, c = z, z
    for t in range(T - 1, -1, -1):
        h_n, c_n = cell(x[:, t], h, c, params["wih_b"], params["whh_b"], params["b_b"])
        valid = (t < lens)[:, None]
        h = jnp.where(valid, h_n, h)
        c = jnp.where(valid, c_n, c)
    feats = jnp.concatenate([out_fwd, h], axis=1)
    return (feats @ params["wd"] + params["bd"])[:, 0]


def init_params(key, embedding_dim, hidden_dim):
    """Deterministic init mimicking PyTorch LSTM/Linear default U(-1/sqrt(H), 1/sqrt(H))."""
    E, H = embedding_dim, hidden_dim
    k = 1.0 / jnp.sqrt(jnp.float32(H))
    keys = jax.random.split(key, 10)

    def u(kk, shape):
        return jax.random.uniform(kk, shape, jnp.float32, -k, k)

    return {
        "wih_f": u(keys[0], (E, 4 * H)),
        "whh_f": u(keys[1], (H, 4 * H)),
        "b_f": u(keys[2], (1, 4 * H)) + u(keys[3], (1, 4 * H)),   # b_ih + b_hh
        "wih_b": u(keys[4], (E, 4 * H)),
        "whh_b": u(keys[5], (H, 4 * H)),
        "b_b": u(keys[6], (1, 4 * H)) + u(keys[7], (1, 4 * H)),
        "wd": u(keys[8], (2 * H, 1)),
        "bd": u(keys[9], (1, 1)),
    }


if __name__ == "__main__":
    # Small shapes consistent with the module: batch=2, seq=8, embedding=64, hidden=32.
    B, T, E, H = 2, 8, 64, 32
    key = jax.random.PRNGKey(0)
    k_x, k_p = jax.random.split(key)

    embeddings = jax.random.normal(k_x, (B, T, E), jnp.float32)
    lengths = jnp.array([T, 5], dtype=jnp.int32)          # variable-length sequences
    params = init_params(k_p, E, H)

    out = bilstm_forward(embeddings, lengths, params)
    out = jax.block_until_ready(out)

    ref = bilstm_reference(embeddings, lengths, params)
    assert out.shape == (B,), out.shape
    # bf16 MXU operands (f32 accumulate / f32 state) shift results by ~1e-3 vs the pure
    # f32 reference; tolerance widened slightly per the perf review.
    assert jnp.allclose(out, ref, atol=2e-2, rtol=1e-2), (out, ref)

    # TODO(synk): nn.Dropout(p=0.5) is identity in eval mode; training-mode stochastic
    # dropout and the optional attention / seq branches (disabled by default ctor args)
    # are not implemented here.
    print("KERNEL_OK")
</pallas_src>

<mosaic_0001>
module attributes {stable_mosaic.version = 11 : i64} {
  func.func @bilstm_kernel(%arg0: i32, %arg1: memref<1x8x8x64xf32, #tpu.memory_space<vmem>>, %arg2: memref<8x1xi32, #tpu.memory_space<vmem>>, %arg3: memref<64x256xbf16, #tpu.memory_space<vmem>>, %arg4: memref<64x256xbf16, #tpu.memory_space<vmem>>, %arg5: memref<1x256xf32, #tpu.memory_space<vmem>>, %arg6: memref<1x32xf32, #tpu.memory_space<vmem>>, %arg7: memref<1x32xf32, #tpu.memory_space<vmem>>, %arg8: memref<1x1xf32, #tpu.memory_space<vmem>>, %arg9: memref<8x1xf32, #tpu.memory_space<vmem>>, %arg10: memref<8x8x128xf32, #tpu.memory_space<vmem>>, %arg11: memref<8x8x128xf32, #tpu.memory_space<vmem>>) attributes {dimension_semantics = [#tpu.dimension_semantics<parallel>], iteration_bounds = array<i64: 1>, scalar_prefetch = 0 : i64, scratch_operands = 2 : i64, tpu.core_type = #tpu.core_type<tc>, window_params = [{transform_indices = @transform_0, window_bounds = array<i64: 1, 8, 8, 64>}, {transform_indices = @transform_1, window_bounds = array<i64: 8, 1>}, {pipeline_mode = #tpu.pipeline_mode<synchronous>, transform_indices = @transform_2, window_bounds = array<i64: 64, 256>}, {pipeline_mode = #tpu.pipeline_mode<synchronous>, transform_indices = @transform_3, window_bounds = array<i64: 64, 256>}, {pipeline_mode = #tpu.pipeline_mode<synchronous>, transform_indices = @transform_4, window_bounds = array<i64: 1, 256>}, {pipeline_mode = #tpu.pipeline_mode<synchronous>, transform_indices = @transform_5, window_bounds = array<i64: 1, 32>}, {pipeline_mode = #tpu.pipeline_mode<synchronous>, transform_indices = @transform_6, window_bounds = array<i64: 1, 32>}, {pipeline_mode = #tpu.pipeline_mode<synchronous>, transform_indices = @transform_7, window_bounds = array<i64: 1, 1>}, {transform_indices = @transform_8, window_bounds = array<i64: 8, 1>}]} {
    %c0 = arith.constant 0 : index
    %c0_0 = arith.constant 0 : index
    %0 = vector.load %arg2[%c0, %c0_0] : memref<8x1xi32, #tpu.memory_space<vmem>>, vector<8x1xi32>
    %c0_1 = arith.constant 0 : index
    %c0_2 = arith.constant 0 : index
    %c0_3 = arith.constant 0 : index
    %c0_4 = arith.constant 0 : index
    %1 = vector.load %arg1[%c0_1, %c0_2, %c0_3, %c0_4] : memref<1x8x8x64xf32, #tpu.memory_space<vmem>>, vector<1x8x8x64xf32>
    %2 = vector.shape_cast %1 : vector<1x8x8x64xf32> to vector<8x8x64xf32>
    %3 = vector.shape_cast %2 : vector<8x8x64xf32> to vector<64x64xf32>
    %4 = arith.truncf %3 : vector<64x64xf32> to vector<64x64xbf16>
    %c0_5 = arith.constant 0 : index
    %c0_6 = arith.constant 0 : index
    %5 = vector.load %arg3[%c0_5, %c0_6] : memref<64x256xbf16, #tpu.memory_space<vmem>>, vector<64x256xbf16>
    %cst = arith.constant dense<0.000000e+00> : vector<64x256xf32>
    %6 = tpu.matmul %4, %5, %cst {dimension_numbers = #tpu.dot_dimension_numbers<[1], [0], [0], [1], [0, 0, 1, 1], [], []>} : vector<64x64xbf16>, vector<64x256xbf16>, vector<64x256xf32> -> vector<64x256xf32>
    %c0_7 = arith.constant 0 : index
    %c0_8 = arith.constant 0 : index
    %7 = vector.load %arg5[%c0_7, %c0_8] : memref<1x256xf32, #tpu.memory_space<vmem>>, vector<1x256xf32>
    %8 = vector.broadcast %7 : vector<1x256xf32> to vector<64x256xf32>
    %9 = arith.addf %6, %8 : vector<64x256xf32>
    %10 = vector.extract_strided_slice %9 {offsets = [0, 0], sizes = [64, 128], strides = [1, 1]} : vector<64x256xf32> to vector<64x128xf32>
    %11 = vector.shape_cast %10 : vector<64x128xf32> to vector<8x8x128xf32>
    %c0_9 = arith.constant 0 : index
    %c0_10 = arith.constant 0 : index
    %c0_11 = arith.constant 0 : index
    %12 = vector.load %arg10[%c0_9, %c0_10, %c0_11] : memref<8x8x128xf32, #tpu.memory_space<vmem>>, vector<8x8x128xf32>
    tpu.vector_store %arg10[%c0_9, %c0_10, %c0_11], %11 {strides = array<i32>} : memref<8x8x128xf32, #tpu.memory_space<vmem>>, vector<8x8x128xf32>,
    %13 = vector.extract_strided_slice %9 {offsets = [0, 128], sizes = [64, 128], strides = [1, 1]} : vector<64x256xf32> to vector<64x128xf32>
    %14 = vector.shape_cast %13 : vector<64x128xf32> to vector<8x8x128xf32>
    %c0_12 = arith.constant 0 : index
    %c0_13 = arith.constant 0 : index
    %c0_14 = arith.constant 0 : index
    %15 = vector.load %arg11[%c0_12, %c0_13, %c0_14] : memref<8x8x128xf32, #tpu.memory_space<vmem>>, vector<8x8x128xf32>
    tpu.vector_store %arg11[%c0_12, %c0_13, %c0_14], %14 {strides = array<i32>} : memref<8x8x128xf32, #tpu.memory_space<vmem>>, vector<8x8x128xf32>,
    %c0_15 = arith.constant 0 : index
    %c0_16 = arith.constant 0 : index
    %16 = vector.load %arg4[%c0_15, %c0_16] : memref<64x256xbf16, #tpu.memory_space<vmem>>, vector<64x256xbf16>
    %cst_17 = arith.constant 0.000000e+00 : f32
    %17 = vector.broadcast %cst_17 : f32 to vector<8x32xf32>
    %c0_i32 = arith.constant 0 : i32
    %c7_i32 = arith.constant 7 : i32
    %18 = arith.subi %c7_i32, %c0_i32 : i32
    %19 = tpu.concatenate %17, %17 in 1 : vector<8x32xf32>, vector<8x32xf32> -> vector<8x64xf32>
    %20 = arith.truncf %19 : vector<8x64xf32> to vector<8x64xbf16>
    %cst_18 = arith.constant dense<0.000000e+00> : vector<8x256xf32>
    %21 = tpu.matmul %20, %16, %cst_18 {dimension_numbers = #tpu.dot_dimension_numbers<[1], [0], [0], [1], [0, 0, 1, 1], [], []>} : vector<8x64xbf16>, vector<64x256xbf16>, vector<8x256xf32> -> vector<8x256xf32>
    %22 = vector.extract_strided_slice %21 {offsets = [0, 0], sizes = [8, 128], strides = [1, 1]} : vector<8x256xf32> to vector<8x128xf32>
    %23 = arith.index_cast %c0_i32 : i32 to index
    %c0_19 = arith.constant 0 : index
    %c0_20 = arith.constant 0 : index
    %24 = vector.load %arg10[%23, %c0_19, %c0_20] : memref<8x8x128xf32, #tpu.memory_space<vmem>>, vector<1x8x128xf32>
    %25 = vector.shape_cast %24 : vector<1x8x128xf32> to vector<8x128xf32>
    %26 = arith.addf %22, %25 : vector<8x128xf32>
    %27 = vector.extract_strided_slice %26 {offsets = [0, 0], sizes = [8, 96], strides = [1, 1]} : vector<8x128xf32> to vector<8x96xf32>
    %28 = arith.negf %27 : vector<8x96xf32>
    %29 = math.exp %28 : vector<8x96xf32>
    %cst_21 = arith.constant 1.000000e+00 : f32
    %30 = vector.broadcast %cst_21 : f32 to vector<8x96xf32>
    %31 = arith.addf %30, %29 : vector<8x96xf32>
    %32 = arith.divf %30, %31 : vector<8x96xf32>
    %33 = vector.extract_strided_slice %32 {offsets = [0, 0], sizes = [8, 32], strides = [1, 1]} : vector<8x96xf32> to vector<8x32xf32>
    %34 = vector.extract_strided_slice %32 {offsets = [0, 32], sizes = [8, 32], strides = [1, 1]} : vector<8x96xf32> to vector<8x32xf32>
    %35 = vector.extract_strided_slice %32 {offsets = [0, 64], sizes = [8, 32], strides = [1, 1]} : vector<8x96xf32> to vector<8x32xf32>
    %36 = vector.extract_strided_slice %26 {offsets = [0, 96], sizes = [8, 32], strides = [1, 1]} : vector<8x128xf32> to vector<8x32xf32>
    %37 = math.tanh %36 : vector<8x32xf32>
    %38 = arith.mulf %34, %17 : vector<8x32xf32>
    %39 = arith.mulf %33, %37 : vector<8x32xf32>
    %40 = arith.addf %38, %39 : vector<8x32xf32>
    %41 = math.tanh %40 : vector<8x32xf32>
    %42 = arith.mulf %35, %41 : vector<8x32xf32>
    %43 = vector.broadcast %c0_i32 : i32 to vector<8x1xi32>
    %44 = arith.cmpi slt, %43, %0 : vector<8x1xi32>
    %45 = vector.shape_cast %44 : vector<8x1xi1> to vector<8x1xi1>
    %46 = vector.broadcast %45 : vector<8x1xi1> to vector<8x32xi1>
    %47 = arith.select %46, %42, %17 : vector<8x32xi1>, vector<8x32xf32>
    %48 = vector.shape_cast %44 : vector<8x1xi1> to vector<8x1xi1>
    %49 = vector.broadcast %48 : vector<8x1xi1> to vector<8x32xi1>
    %50 = arith.select %49, %40, %17 : vector<8x32xi1>, vector<8x32xf32>
    %51 = vector.extract_strided_slice %21 {offsets = [0, 128], sizes = [8, 128], strides = [1, 1]} : vector<8x256xf32> to vector<8x128xf32>
    %52 = arith.index_cast %18 : i32 to index
    %c0_22 = arith.constant 0 : index
    %c0_23 = arith.constant 0 : index
    %53 = vector.load %arg11[%52, %c0_22, %c0_23] : memref<8x8x128xf32, #tpu.memory_space<vmem>>, vector<1x8x128xf32>
    %54 = vector.shape_cast %53 : vector<1x8x128xf32> to vector<8x128xf32>
    %55 = arith.addf %51, %54 : vector<8x128xf32>
    %56 = vector.extract_strided_slice %55 {offsets = [0, 0], sizes = [8, 96], strides = [1, 1]} : vector<8x128xf32> to vector<8x96xf32>
    %57 = arith.negf %56 : vector<8x96xf32>
    %58 = math.exp %57 : vector<8x96xf32>
    %cst_24 = arith.constant 1.000000e+00 : f32
    %59 = vector.broadcast %cst_24 : f32 to vector<8x96xf32>
    %60 = arith.addf %59, %58 : vector<8x96xf32>
    %61 = arith.divf %59, %60 : vector<8x96xf32>
    %62 = vector.extract_strided_slice %61 {offsets = [0, 0], sizes = [8, 32], strides = [1, 1]} : vector<8x96xf32> to vector<8x32xf32>
    %63 = vector.extract_strided_slice %61 {offsets = [0, 32], sizes = [8, 32], strides = [1, 1]} : vector<8x96xf32> to vector<8x32xf32>
    %64 = vector.extract_strided_slice %61 {offsets = [0, 64], sizes = [8, 32], strides = [1, 1]} : vector<8x96xf32> to vector<8x32xf32>
    %65 = vector.extract_strided_slice %55 {offsets = [0, 96], sizes = [8, 32], strides = [1, 1]} : vector<8x128xf32> to vector<8x32xf32>
    %66 = math.tanh %65 : vector<8x32xf32>
    %67 = arith.mulf %63, %17 : vector<8x32xf32>
    %68 = arith.mulf %62, %66 : vector<8x32xf32>
    %69 = arith.addf %67, %68 : vector<8x32xf32>
    %70 = math.tanh %69 : vector<8x32xf32>
    %71 = arith.mulf %64, %70 : vector<8x32xf32>
    %72 = vector.broadcast %18 : i32 to vector<8x1xi32>
    %73 = arith.cmpi slt, %72, %0 : vector<8x1xi32>
    %74 = vector.shape_cast %73 : vector<8x1xi1> to vector<8x1xi1>
    %75 = vector.broadcast %74 : vector<8x1xi1> to vector<8x32xi1>
    %76 = arith.select %75, %71, %17 : vector<8x32xi1>, vector<8x32xf32>
    %77 = vector.shape_cast %73 : vector<8x1xi1> to vector<8x1xi1>
    %78 = vector.broadcast %77 : vector<8x1xi1> to vector<8x32xi1>
    %79 = arith.select %78, %69, %17 : vector<8x32xi1>, vector<8x32xf32>
    %c1_i32 = arith.constant 1 : i32
    %c7_i32_25 = arith.constant 7 : i32
    %80 = arith.subi %c7_i32_25, %c1_i32 : i32
    %81 = tpu.concatenate %47, %76 in 1 : vector<8x32xf32>, vector<8x32xf32> -> vector<8x64xf32>
    %82 = arith.truncf %81 : vector<8x64xf32> to vector<8x64xbf16>
    %cst_26 = arith.constant dense<0.000000e+00> : vector<8x256xf32>
    %83 = tpu.matmul %82, %16, %cst_26 {dimension_numbers = #tpu.dot_dimension_numbers<[1], [0], [0], [1], [0, 0, 1, 1], [], []>} : vector<8x64xbf16>, vector<64x256xbf16>, vector<8x256xf32> -> vector<8x256xf32>
    %84 = vector.extract_strided_slice %83 {offsets = [0, 0], sizes = [8, 128], strides = [1, 1]} : vector<8x256xf32> to vector<8x128xf32>
    %85 = arith.index_cast %c1_i32 : i32 to index
    %c0_27 = arith.constant 0 : index
    %c0_28 = arith.constant 0 : index
    %86 = vector.load %arg10[%85, %c0_27, %c0_28] : memref<8x8x128xf32, #tpu.memory_space<vmem>>, vector<1x8x128xf32>
    %87 = vector.shape_cast %86 : vector<1x8x128xf32> to vector<8x128xf32>
    %88 = arith.addf %84, %87 : vector<8x128xf32>
    %89 = vector.extract_strided_slice %88 {offsets = [0, 0], sizes = [8, 96], strides = [1, 1]} : vector<8x128xf32> to vector<8x96xf32>
    %90 = arith.negf %89 : vector<8x96xf32>
    %91 = math.exp %90 : vector<8x96xf32>
    %cst_29 = arith.constant 1.000000e+00 : f32
    %92 = vector.broadcast %cst_29 : f32 to vector<8x96xf32>
    %93 = arith.addf %92, %91 : vector<8x96xf32>
    %94 = arith.divf %92, %93 : vector<8x96xf32>
    %95 = vector.extract_strided_slice %94 {offsets = [0, 0], sizes = [8, 32], strides = [1, 1]} : vector<8x96xf32> to vector<8x32xf32>
    %96 = vector.extract_strided_slice %94 {offsets = [0, 32], sizes = [8, 32], strides = [1, 1]} : vector<8x96xf32> to vector<8x32xf32>
    %97 = vector.extract_strided_slice %94 {offsets = [0, 64], sizes = [8, 32], strides = [1, 1]} : vector<8x96xf32> to vector<8x32xf32>
    %98 = vector.extract_strided_slice %88 {offsets = [0, 96], sizes = [8, 32], strides = [1, 1]} : vector<8x128xf32> to vector<8x32xf32>
    %99 = math.tanh %98 : vector<8x32xf32>
    %100 = arith.mulf %96, %50 : vector<8x32xf32>
    %101 = arith.mulf %95, %99 : vector<8x32xf32>
    %102 = arith.addf %100, %101 : vector<8x32xf32>
    %103 = math.tanh %102 : vector<8x32xf32>
    %104 = arith.mulf %97, %103 : vector<8x32xf32>
    %105 = vector.broadcast %c1_i32 : i32 to vector<8x1xi32>
    %106 = arith.cmpi slt, %105, %0 : vector<8x1xi32>
    %107 = vector.shape_cast %106 : vector<8x1xi1> to vector<8x1xi1>
    %108 = vector.broadcast %107 : vector<8x1xi1> to vector<8x32xi1>
    %109 = arith.select %108, %104, %47 : vector<8x32xi1>, vector<8x32xf32>
    %110 = vector.shape_cast %106 : vector<8x1xi1> to vector<8x1xi1>
    %111 = vector.broadcast %110 : vector<8x1xi1> to vector<8x32xi1>
    %112 = arith.select %111, %102, %50 : vector<8x32xi1>, vector<8x32xf32>
    %113 = vector.extract_strided_slice %83 {offsets = [0, 128], sizes = [8, 128], strides = [1, 1]} : vector<8x256xf32> to vector<8x128xf32>
    %114 = arith.index_cast %80 : i32 to index
    %c0_30 = arith.constant 0 : index
    %c0_31 = arith.constant 0 : index
    %115 = vector.load %arg11[%114, %c0_30, %c0_31] : memref<8x8x128xf32, #tpu.memory_space<vmem>>, vector<1x8x128xf32>
    %116 = vector.shape_cast %115 : vector<1x8x128xf32> to vector<8x128xf32>
    %117 = arith.addf %113, %116 : vector<8x128xf32>
    %118 = vector.extract_strided_slice %117 {offsets = [0, 0], sizes = [8, 96], strides = [1, 1]} : vector<8x128xf32> to vector<8x96xf32>
    %119 = arith.negf %118 : vector<8x96xf32>
    %120 = math.exp %119 : vector<8x96xf32>
    %cst_32 = arith.constant 1.000000e+00 : f32
    %121 = vector.broadcast %cst_32 : f32 to vector<8x96xf32>
    %122 = arith.addf %121, %120 : vector<8x96xf32>
    %123 = arith.divf %121, %122 : vector<8x96xf32>
    %124 = vector.extract_strided_slice %123 {offsets = [0, 0], sizes = [8, 32], strides = [1, 1]} : vector<8x96xf32> to vector<8x32xf32>
    %125 = vector.extract_strided_slice %123 {offsets = [0, 32], sizes = [8, 32], strides = [1, 1]} : vector<8x96xf32> to vector<8x32xf32>
    %126 = vector.extract_strided_slice %123 {offsets = [0, 64], sizes = [8, 32], strides = [1, 1]} : vector<8x96xf32> to vector<8x32xf32>
    %127 = vector.extract_strided_slice %117 {offsets = [0, 96], sizes = [8, 32], strides = [1, 1]} : vector<8x128xf32> to vector<8x32xf32>
    %128 = math.tanh %127 : vector<8x32xf32>
    %129 = arith.mulf %125, %79 : vector<8x32xf32>
    %130 = arith.mulf %124, %128 : vector<8x32xf32>
    %131 = arith.addf %129, %130 : vector<8x32xf32>
    %132 = math.tanh %131 : vector<8x32xf32>
    %133 = arith.mulf %126, %132 : vector<8x32xf32>
    %134 = vector.broadcast %80 : i32 to vector<8x1xi32>
    %135 = arith.cmpi slt, %134, %0 : vector<8x1xi32>
    %136 = vector.shape_cast %135 : vector<8x1xi1> to vector<8x1xi1>
    %137 = vector.broadcast %136 : vector<8x1xi1> to vector<8x32xi1>
    %138 = arith.select %137, %133, %76 : vector<8x32xi1>, vector<8x32xf32>
    %139 = vector.shape_cast %135 : vector<8x1xi1> to vector<8x1xi1>
    %140 = vector.broadcast %139 : vector<8x1xi1> to vector<8x32xi1>
    %141 = arith.select %140, %131, %79 : vector<8x32xi1>, vector<8x32xf32>
    %c2_i32 = arith.constant 2 : i32
    %c7_i32_33 = arith.constant 7 : i32
    %142 = arith.subi %c7_i32_33, %c2_i32 : i32
    %143 = tpu.concatenate %109, %138 in 1 : vector<8x32xf32>, vector<8x32xf32> -> vector<8x64xf32>
    %144 = arith.truncf %143 : vector<8x64xf32> to vector<8x64xbf16>
    %cst_34 = arith.constant dense<0.000000e+00> : vector<8x256xf32>
    %145 = tpu.matmul %144, %16, %cst_34 {dimension_numbers = #tpu.dot_dimension_numbers<[1], [0], [0], [1], [0, 0, 1, 1], [], []>} : vector<8x64xbf16>, vector<64x256xbf16>, vector<8x256xf32> -> vector<8x256xf32>
    %146 = vector.extract_strided_slice %145 {offsets = [0, 0], sizes = [8, 128], strides = [1, 1]} : vector<8x256xf32> to vector<8x128xf32>
    %147 = arith.index_cast %c2_i32 : i32 to index
    %c0_35 = arith.constant 0 : index
    %c0_36 = arith.constant 0 : index
    %148 = vector.load %arg10[%147, %c0_35, %c0_36] : memref<8x8x128xf32, #tpu.memory_space<vmem>>, vector<1x8x128xf32>
    %149 = vector.shape_cast %148 : vector<1x8x128xf32> to vector<8x128xf32>
    %150 = arith.addf %146, %149 : vector<8x128xf32>
    %151 = vector.extract_strided_slice %150 {offsets = [0, 0], sizes = [8, 96], strides = [1, 1]} : vector<8x128xf32> to vector<8x96xf32>
    %152 = arith.negf %151 : vector<8x96xf32>
    %153 = math.exp %152 : vector<8x96xf32>
    %cst_37 = arith.constant 1.000000e+00 : f32
    %154 = vector.broadcast %cst_37 : f32 to vector<8x96xf32>
    %155 = arith.addf %154, %153 : vector<8x96xf32>
    %156 = arith.divf %154, %155 : vector<8x96xf32>
    %157 = vector.extract_strided_slice %156 {offsets = [0, 0], sizes = [8, 32], strides = [1, 1]} : vector<8x96xf32> to vector<8x32xf32>
    %158 = vector.extract_strided_slice %156 {offsets = [0, 32], sizes = [8, 32], strides = [1, 1]} : vector<8x96xf32> to vector<8x32xf32>
    %159 = vector.extract_strided_slice %156 {offsets = [0, 64], sizes = [8, 32], strides = [1, 1]} : vector<8x96xf32> to vector<8x32xf32>
    %160 = vector.extract_strided_slice %150 {offsets = [0, 96], sizes = [8, 32], strides = [1, 1]} : vector<8x128xf32> to vector<8x32xf32>
    %161 = math.tanh %160 : vector<8x32xf32>
    %162 = arith.mulf %158, %112 : vector<8x32xf32>
    %163 = arith.mulf %157, %161 : vector<8x32xf32>
    %164 = arith.addf %162, %163 : vector<8x32xf32>
    %165 = math.tanh %164 : vector<8x32xf32>
    %166 = arith.mulf %159, %165 : vector<8x32xf32>
    %167 = vector.broadcast %c2_i32 : i32 to vector<8x1xi32>
    %168 = arith.cmpi slt, %167, %0 : vector<8x1xi32>
    %169 = vector.shape_cast %168 : vector<8x1xi1> to vector<8x1xi1>
    %170 = vector.broadcast %169 : vector<8x1xi1> to vector<8x32xi1>
    %171 = arith.select %170, %166, %109 : vector<8x32xi1>, vector<8x32xf32>
    %172 = vector.shape_cast %168 : vector<8x1xi1> to vector<8x1xi1>
    %173 = vector.broadcast %172 : vector<8x1xi1> to vector<8x32xi1>
    %174 = arith.select %173, %164, %112 : vector<8x32xi1>, vector<8x32xf32>
    %175 = vector.extract_strided_slice %145 {offsets = [0, 128], sizes = [8, 128], strides = [1, 1]} : vector<8x256xf32> to vector<8x128xf32>
    %176 = arith.index_cast %142 : i32 to index
    %c0_38 = arith.constant 0 : index
    %c0_39 = arith.constant 0 : index
    %177 = vector.load %arg11[%176, %c0_38, %c0_39] : memref<8x8x128xf32, #tpu.memory_space<vmem>>, vector<1x8x128xf32>
    %178 = vector.shape_cast %177 : vector<1x8x128xf32> to vector<8x128xf32>
    %179 = arith.addf %175, %178 : vector<8x128xf32>
    %180 = vector.extract_strided_slice %179 {offsets = [0, 0], sizes = [8, 96], strides = [1, 1]} : vector<8x128xf32> to vector<8x96xf32>
    %181 = arith.negf %180 : vector<8x96xf32>
    %182 = math.exp %181 : vector<8x96xf32>
    %cst_40 = arith.constant 1.000000e+00 : f32
    %183 = vector.broadcast %cst_40 : f32 to vector<8x96xf32>
    %184 = arith.addf %183, %182 : vector<8x96xf32>
    %185 = arith.divf %183, %184 : vector<8x96xf32>
    %186 = vector.extract_strided_slice %185 {offsets = [0, 0], sizes = [8, 32], strides = [1, 1]} : vector<8x96xf32> to vector<8x32xf32>
    %187 = vector.extract_strided_slice %185 {offsets = [0, 32], sizes = [8, 32], strides = [1, 1]} : vector<8x96xf32> to vector<8x32xf32>
    %188 = vector.extract_strided_slice %185 {offsets = [0, 64], sizes = [8, 32], strides = [1, 1]} : vector<8x96xf32> to vector<8x32xf32>
    %189 = vector.extract_strided_slice %179 {offsets = [0, 96], sizes = [8, 32], strides = [1, 1]} : vector<8x128xf32> to vector<8x32xf32>
    %190 = math.tanh %189 : vector<8x32xf32>
    %191 = arith.mulf %187, %141 : vector<8x32xf32>
    %192 = arith.mulf %186, %190 : vector<8x32xf32>
    %193 = arith.addf %191, %192 : vector<8x32xf32>
    %194 = math.tanh %193 : vector<8x32xf32>
    %195 = arith.mulf %188, %194 : vector<8x32xf32>
    %196 = vector.broadcast %142 : i32 to vector<8x1xi32>
    %197 = arith.cmpi slt, %196, %0 : vector<8x1xi32>
    %198 = vector.shape_cast %197 : vector<8x1xi1> to vector<8x1xi1>
    %199 = vector.broadcast %198 : vector<8x1xi1> to vector<8x32xi1>
    %200 = arith.select %199, %195, %138 : vector<8x32xi1>, vector<8x32xf32>
    %201 = vector.shape_cast %197 : vector<8x1xi1> to vector<8x1xi1>
    %202 = vector.broadcast %201 : vector<8x1xi1> to vector<8x32xi1>
    %203 = arith.select %202, %193, %141 : vector<8x32xi1>, vector<8x32xf32>
    %c3_i32 = arith.constant 3 : i32
    %c7_i32_41 = arith.constant 7 : i32
    %204 = arith.subi %c7_i32_41, %c3_i32 : i32
    %205 = tpu.concatenate %171, %200 in 1 : vector<8x32xf32>, vector<8x32xf32> -> vector<8x64xf32>
    %206 = arith.truncf %205 : vector<8x64xf32> to vector<8x64xbf16>
    %cst_42 = arith.constant dense<0.000000e+00> : vector<8x256xf32>
    %207 = tpu.matmul %206, %16, %cst_42 {dimension_numbers = #tpu.dot_dimension_numbers<[1], [0], [0], [1], [0, 0, 1, 1], [], []>} : vector<8x64xbf16>, vector<64x256xbf16>, vector<8x256xf32> -> vector<8x256xf32>
    %208 = vector.extract_strided_slice %207 {offsets = [0, 0], sizes = [8, 128], strides = [1, 1]} : vector<8x256xf32> to vector<8x128xf32>
    %209 = arith.index_cast %c3_i32 : i32 to index
    %c0_43 = arith.constant 0 : index
    %c0_44 = arith.constant 0 : index
    %210 = vector.load %arg10[%209, %c0_43, %c0_44] : memref<8x8x128xf32, #tpu.memory_space<vmem>>, vector<1x8x128xf32>
    %211 = vector.shape_cast %210 : vector<1x8x128xf32> to vector<8x128xf32>
    %212 = arith.addf %208, %211 : vector<8x128xf32>
    %213 = vector.extract_strided_slice %212 {offsets = [0, 0], sizes = [8, 96], strides = [1, 1]} : vector<8x128xf32> to vector<8x96xf32>
    %214 = arith.negf %213 : vector<8x96xf32>
    %215 = math.exp %214 : vector<8x96xf32>
    %cst_45 = arith.constant 1.000000e+00 : f32
    %216 = vector.broadcast %cst_45 : f32 to vector<8x96xf32>
    %217 = arith.addf %216, %215 : vector<8x96xf32>
    %218 = arith.divf %216, %217 : vector<8x96xf32>
    %219 = vector.extract_strided_slice %218 {offsets = [0, 0], sizes = [8, 32], strides = [1, 1]} : vector<8x96xf32> to vector<8x32xf32>
    %220 = vector.extract_strided_slice %218 {offsets = [0, 32], sizes = [8, 32], strides = [1, 1]} : vector<8x96xf32> to vector<8x32xf32>
    %221 = vector.extract_strided_slice %218 {offsets = [0, 64], sizes = [8, 32], strides = [1, 1]} : vector<8x96xf32> to vector<8x32xf32>
    %222 = vector.extract_strided_slice %212 {offsets = [0, 96], sizes = [8, 32], strides = [1, 1]} : vector<8x128xf32> to vector<8x32xf32>
    %223 = math.tanh %222 : vector<8x32xf32>
    %224 = arith.mulf %220, %174 : vector<8x32xf32>
    %225 = arith.mulf %219, %223 : vector<8x32xf32>
    %226 = arith.addf %224, %225 : vector<8x32xf32>
    %227 = math.tanh %226 : vector<8x32xf32>
    %228 = arith.mulf %221, %227 : vector<8x32xf32>
    %229 = vector.broadcast %c3_i32 : i32 to vector<8x1xi32>
    %230 = arith.cmpi slt, %229, %0 : vector<8x1xi32>
    %231 = vector.shape_cast %230 : vector<8x1xi1> to vector<8x1xi1>
    %232 = vector.broadcast %231 : vector<8x1xi1> to vector<8x32xi1>
    %233 = arith.select %232, %228, %171 : vector<8x32xi1>, vector<8x32xf32>
    %234 = vector.shape_cast %230 : vector<8x1xi1> to vector<8x1xi1>
    %235 = vector.broadcast %234 : vector<8x1xi1> to vector<8x32xi1>
    %236 = arith.select %235, %226, %174 : vector<8x32xi1>, vector<8x32xf32>
    %237 = vector.extract_strided_slice %207 {offsets = [0, 128], sizes = [8, 128], strides = [1, 1]} : vector<8x256xf32> to vector<8x128xf32>
    %238 = arith.index_cast %204 : i32 to index
    %c0_46 = arith.constant 0 : index
    %c0_47 = arith.constant 0 : index
    %239 = vector.load %arg11[%238, %c0_46, %c0_47] : memref<8x8x128xf32, #tpu.memory_space<vmem>>, vector<1x8x128xf32>
    %240 = vector.shape_cast %239 : vector<1x8x128xf32> to vector<8x128xf32>
    %241 = arith.addf %237, %240 : vector<8x128xf32>
    %242 = vector.extract_strided_slice %241 {offsets = [0, 0], sizes = [8, 96], strides = [1, 1]} : vector<8x128xf32> to vector<8x96xf32>
    %243 = arith.negf %242 : vector<8x96xf32>
    %244 = math.exp %243 : vector<8x96xf32>
    %cst_48 = arith.constant 1.000000e+00 : f32
    %245 = vector.broadcast %cst_48 : f32 to vector<8x96xf32>
    %246 = arith.addf %245, %244 : vector<8x96xf32>
    %247 = arith.divf %245, %246 : vector<8x96xf32>
    %248 = vector.extract_strided_slice %247 {offsets = [0, 0], sizes = [8, 32], strides = [1, 1]} : vector<8x96xf32> to vector<8x32xf32>
    %249 = vector.extract_strided_slice %247 {offsets = [0, 32], sizes = [8, 32], strides = [1, 1]} : vector<8x96xf32> to vector<8x32xf32>
    %250 = vector.extract_strided_slice %247 {offsets = [0, 64], sizes = [8, 32], strides = [1, 1]} : vector<8x96xf32> to vector<8x32xf32>
    %251 = vector.extract_strided_slice %241 {offsets = [0, 96], sizes = [8, 32], strides = [1, 1]} : vector<8x128xf32> to vector<8x32xf32>
    %252 = math.tanh %251 : vector<8x32xf32>
    %253 = arith.mulf %249, %203 : vector<8x32xf32>
    %254 = arith.mulf %248, %252 : vector<8x32xf32>
    %255 = arith.addf %253, %254 : vector<8x32xf32>
    %256 = math.tanh %255 : vector<8x32xf32>
    %257 = arith.mulf %250, %256 : vector<8x32xf32>
    %258 = vector.broadcast %204 : i32 to vector<8x1xi32>
    %259 = arith.cmpi slt, %258, %0 : vector<8x1xi32>
    %260 = vector.shape_cast %259 : vector<8x1xi1> to vector<8x1xi1>
    %261 = vector.broadcast %260 : vector<8x1xi1> to vector<8x32xi1>
    %262 = arith.select %261, %257, %200 : vector<8x32xi1>, vector<8x32xf32>
    %263 = vector.shape_cast %259 : vector<8x1xi1> to vector<8x1xi1>
    %264 = vector.broadcast %263 : vector<8x1xi1> to vector<8x32xi1>
    %265 = arith.select %264, %255, %203 : vector<8x32xi1>, vector<8x32xf32>
    %c4_i32 = arith.constant 4 : i32
    %c7_i32_49 = arith.constant 7 : i32
    %266 = arith.subi %c7_i32_49, %c4_i32 : i32
    %267 = tpu.concatenate %233, %262 in 1 : vector<8x32xf32>, vector<8x32xf32> -> vector<8x64xf32>
    %268 = arith.truncf %267 : vector<8x64xf32> to vector<8x64xbf16>
    %cst_50 = arith.constant dense<0.000000e+00> : vector<8x256xf32>
    %269 = tpu.matmul %268, %16, %cst_50 {dimension_numbers = #tpu.dot_dimension_numbers<[1], [0], [0], [1], [0, 0, 1, 1], [], []>} : vector<8x64xbf16>, vector<64x256xbf16>, vector<8x256xf32> -> vector<8x256xf32>
    %270 = vector.extract_strided_slice %269 {offsets = [0, 0], sizes = [8, 128], strides = [1, 1]} : vector<8x256xf32> to vector<8x128xf32>
    %271 = arith.index_cast %c4_i32 : i32 to index
    %c0_51 = arith.constant 0 : index
    %c0_52 = arith.constant 0 : index
    %272 = vector.load %arg10[%271, %c0_51, %c0_52] : memref<8x8x128xf32, #tpu.memory_space<vmem>>, vector<1x8x128xf32>
    %273 = vector.shape_cast %272 : vector<1x8x128xf32> to vector<8x128xf32>
    %274 = arith.addf %270, %273 : vector<8x128xf32>
    %275 = vector.extract_strided_slice %274 {offsets = [0, 0], sizes = [8, 96], strides = [1, 1]} : vector<8x128xf32> to vector<8x96xf32>
    %276 = arith.negf %275 : vector<8x96xf32>
    %277 = math.exp %276 : vector<8x96xf32>
    %cst_53 = arith.constant 1.000000e+00 : f32
    %278 = vector.broadcast %cst_53 : f32 to vector<8x96xf32>
    %279 = arith.addf %278, %277 : vector<8x96xf32>
    %280 = arith.divf %278, %279 : vector<8x96xf32>
    %281 = vector.extract_strided_slice %280 {offsets = [0, 0], sizes = [8, 32], strides = [1, 1]} : vector<8x96xf32> to vector<8x32xf32>
    %282 = vector.extract_strided_slice %280 {offsets = [0, 32], sizes = [8, 32], strides = [1, 1]} : vector<8x96xf32> to vector<8x32xf32>
    %283 = vector.extract_strided_slice %280 {offsets = [0, 64], sizes = [8, 32], strides = [1, 1]} : vector<8x96xf32> to vector<8x32xf32>
    %284 = vector.extract_strided_slice %274 {offsets = [0, 96], sizes = [8, 32], strides = [1, 1]} : vector<8x128xf32> to vector<8x32xf32>
    %285 = math.tanh %284 : vector<8x32xf32>
    %286 = arith.mulf %282, %236 : vector<8x32xf32>
    %287 = arith.mulf %281, %285 : vector<8x32xf32>
    %288 = arith.addf %286, %287 : vector<8x32xf32>
    %289 = math.tanh %288 : vector<8x32xf32>
    %290 = arith.mulf %283, %289 : vector<8x32xf32>
    %291 = vector.broadcast %c4_i32 : i32 to vector<8x1xi32>
    %292 = arith.cmpi slt, %291, %0 : vector<8x1xi32>
    %293 = vector.shape_cast %292 : vector<8x1xi1> to vector<8x1xi1>
    %294 = vector.broadcast %293 : vector<8x1xi1> to vector<8x32xi1>
    %295 = arith.select %294, %290, %233 : vector<8x32xi1>, vector<8x32xf32>
    %296 = vector.shape_cast %292 : vector<8x1xi1> to vector<8x1xi1>
    %297 = vector.broadcast %296 : vector<8x1xi1> to vector<8x32xi1>
    %298 = arith.select %297, %288, %236 : vector<8x32xi1>, vector<8x32xf32>
    %299 = vector.extract_strided_slice %269 {offsets = [0, 128], sizes = [8, 128], strides = [1, 1]} : vector<8x256xf32> to vector<8x128xf32>
    %300 = arith.index_cast %266 : i32 to index
    %c0_54 = arith.constant 0 : index
    %c0_55 = arith.constant 0 : index
    %301 = vector.load %arg11[%300, %c0_54, %c0_55] : memref<8x8x128xf32, #tpu.memory_space<vmem>>, vector<1x8x128xf32>
    %302 = vector.shape_cast %301 : vector<1x8x128xf32> to vector<8x128xf32>
    %303 = arith.addf %299, %302 : vector<8x128xf32>
    %304 = vector.extract_strided_slice %303 {offsets = [0, 0], sizes = [8, 96], strides = [1, 1]} : vector<8x128xf32> to vector<8x96xf32>
    %305 = arith.negf %304 : vector<8x96xf32>
    %306 = math.exp %305 : vector<8x96xf32>
    %cst_56 = arith.constant 1.000000e+00 : f32
    %307 = vector.broadcast %cst_56 : f32 to vector<8x96xf32>
    %308 = arith.addf %307, %306 : vector<8x96xf32>
    %309 = arith.divf %307, %308 : vector<8x96xf32>
    %310 = vector.extract_strided_slice %309 {offsets = [0, 0], sizes = [8, 32], strides = [1, 1]} : vector<8x96xf32> to vector<8x32xf32>
    %311 = vector.extract_strided_slice %309 {offsets = [0, 32], sizes = [8, 32], strides = [1, 1]} : vector<8x96xf32> to vector<8x32xf32>
    %312 = vector.extract_strided_slice %309 {offsets = [0, 64], sizes = [8, 32], strides = [1, 1]} : vector<8x96xf32> to vector<8x32xf32>
    %313 = vector.extract_strided_slice %303 {offsets = [0, 96], sizes = [8, 32], strides = [1, 1]} : vector<8x128xf32> to vector<8x32xf32>
    %314 = math.tanh %313 : vector<8x32xf32>
    %315 = arith.mulf %311, %265 : vector<8x32xf32>
    %316 = arith.mulf %310, %314 : vector<8x32xf32>
    %317 = arith.addf %315, %316 : vector<8x32xf32>
    %318 = math.tanh %317 : vector<8x32xf32>
    %319 = arith.mulf %312, %318 : vector<8x32xf32>
    %320 = vector.broadcast %266 : i32 to vector<8x1xi32>
    %321 = arith.cmpi slt, %320, %0 : vector<8x1xi32>
    %322 = vector.shape_cast %321 : vector<8x1xi1> to vector<8x1xi1>
    %323 = vector.broadcast %322 : vector<8x1xi1> to vector<8x32xi1>
    %324 = arith.select %323, %319, %262 : vector<8x32xi1>, vector<8x32xf32>
    %325 = vector.shape_cast %321 : vector<8x1xi1> to vector<8x1xi1>
    %326 = vector.broadcast %325 : vector<8x1xi1> to vector<8x32xi1>
    %327 = arith.select %326, %317, %265 : vector<8x32xi1>, vector<8x32xf32>
    %c5_i32 = arith.constant 5 : i32
    %c7_i32_57 = arith.constant 7 : i32
    %328 = arith.subi %c7_i32_57, %c5_i32 : i32
    %329 = tpu.concatenate %295, %324 in 1 : vector<8x32xf32>, vector<8x32xf32> -> vector<8x64xf32>
    %330 = arith.truncf %329 : vector<8x64xf32> to vector<8x64xbf16>
    %cst_58 = arith.constant dense<0.000000e+00> : vector<8x256xf32>
    %331 = tpu.matmul %330, %16, %cst_58 {dimension_numbers = #tpu.dot_dimension_numbers<[1], [0], [0], [1], [0, 0, 1, 1], [], []>} : vector<8x64xbf16>, vector<64x256xbf16>, vector<8x256xf32> -> vector<8x256xf32>
    %332 = vector.extract_strided_slice %331 {offsets = [0, 0], sizes = [8, 128], strides = [1, 1]} : vector<8x256xf32> to vector<8x128xf32>
    %333 = arith.index_cast %c5_i32 : i32 to index
    %c0_59 = arith.constant 0 : index
    %c0_60 = arith.constant 0 : index
    %334 = vector.load %arg10[%333, %c0_59, %c0_60] : memref<8x8x128xf32, #tpu.memory_space<vmem>>, vector<1x8x128xf32>
    %335 = vector.shape_cast %334 : vector<1x8x128xf32> to vector<8x128xf32>
    %336 = arith.addf %332, %335 : vector<8x128xf32>
    %337 = vector.extract_strided_slice %336 {offsets = [0, 0], sizes = [8, 96], strides = [1, 1]} : vector<8x128xf32> to vector<8x96xf32>
    %338 = arith.negf %337 : vector<8x96xf32>
    %339 = math.exp %338 : vector<8x96xf32>
    %cst_61 = arith.constant 1.000000e+00 : f32
    %340 = vector.broadcast %cst_61 : f32 to vector<8x96xf32>
    %341 = arith.addf %340, %339 : vector<8x96xf32>
    %342 = arith.divf %340, %341 : vector<8x96xf32>
    %343 = vector.extract_strided_slice %342 {offsets = [0, 0], sizes = [8, 32], strides = [1, 1]} : vector<8x96xf32> to vector<8x32xf32>
    %344 = vector.extract_strided_slice %342 {offsets = [0, 32], sizes = [8, 32], strides = [1, 1]} : vector<8x96xf32> to vector<8x32xf32>
    %345 = vector.extract_strided_slice %342 {offsets = [0, 64], sizes = [8, 32], strides = [1, 1]} : vector<8x96xf32> to vector<8x32xf32>
    %346 = vector.extract_strided_slice %336 {offsets = [0, 96], sizes = [8, 32], strides = [1, 1]} : vector<8x128xf32> to vector<8x32xf32>
    %347 = math.tanh %346 : vector<8x32xf32>
    %348 = arith.mulf %344, %298 : vector<8x32xf32>
    %349 = arith.mulf %343, %347 : vector<8x32xf32>
    %350 = arith.addf %348, %349 : vector<8x32xf32>
    %351 = math.tanh %350 : vector<8x32xf32>
    %352 = arith.mulf %345, %351 : vector<8x32xf32>
    %353 = vector.broadcast %c5_i32 : i32 to vector<8x1xi32>
    %354 = arith.cmpi slt, %353, %0 : vector<8x1xi32>
    %355 = vector.shape_cast %354 : vector<8x1xi1> to vector<8x1xi1>
    %356 = vector.broadcast %355 : vector<8x1xi1> to vector<8x32xi1>
    %357 = arith.select %356, %352, %295 : vector<8x32xi1>, vector<8x32xf32>
    %358 = vector.shape_cast %354 : vector<8x1xi1> to vector<8x1xi1>
    %359 = vector.broadcast %358 : vector<8x1xi1> to vector<8x32xi1>
    %360 = arith.select %359, %350, %298 : vector<8x32xi1>, vector<8x32xf32>
    %361 = vector.extract_strided_slice %331 {offsets = [0, 128], sizes = [8, 128], strides = [1, 1]} : vector<8x256xf32> to vector<8x128xf32>
    %362 = arith.index_cast %328 : i32 to index
    %c0_62 = arith.constant 0 : index
    %c0_63 = arith.constant 0 : index
    %363 = vector.load %arg11[%362, %c0_62, %c0_63] : memref<8x8x128xf32, #tpu.memory_space<vmem>>, vector<1x8x128xf32>
    %364 = vector.shape_cast %363 : vector<1x8x128xf32> to vector<8x128xf32>
    %365 = arith.addf %361, %364 : vector<8x128xf32>
    %366 = vector.extract_strided_slice %365 {offsets = [0, 0], sizes = [8, 96], strides = [1, 1]} : vector<8x128xf32> to vector<8x96xf32>
    %367 = arith.negf %366 : vector<8x96xf32>
    %368 = math.exp %367 : vector<8x96xf32>
    %cst_64 = arith.constant 1.000000e+00 : f32
    %369 = vector.broadcast %cst_64 : f32 to vector<8x96xf32>
    %370 = arith.addf %369, %368 : vector<8x96xf32>
    %371 = arith.divf %369, %370 : vector<8x96xf32>
    %372 = vector.extract_strided_slice %371 {offsets = [0, 0], sizes = [8, 32], strides = [1, 1]} : vector<8x96xf32> to vector<8x32xf32>
    %373 = vector.extract_strided_slice %371 {offsets = [0, 32], sizes = [8, 32], strides = [1, 1]} : vector<8x96xf32> to vector<8x32xf32>
    %374 = vector.extract_strided_slice %371 {offsets = [0, 64], sizes = [8, 32], strides = [1, 1]} : vector<8x96xf32> to vector<8x32xf32>
    %375 = vector.extract_strided_slice %365 {offsets = [0, 96], sizes = [8, 32], strides = [1, 1]} : vector<8x128xf32> to vector<8x32xf32>
    %376 = math.tanh %375 : vector<8x32xf32>
    %377 = arith.mulf %373, %327 : vector<8x32xf32>
    %378 = arith.mulf %372, %376 : vector<8x32xf32>
    %379 = arith.addf %377, %378 : vector<8x32xf32>
    %380 = math.tanh %379 : vector<8x32xf32>
    %381 = arith.mulf %374, %380 : vector<8x32xf32>
    %382 = vector.broadcast %328 : i32 to vector<8x1xi32>
    %383 = arith.cmpi slt, %382, %0 : vector<8x1xi32>
    %384 = vector.shape_cast %383 : vector<8x1xi1> to vector<8x1xi1>
    %385 = vector.broadcast %384 : vector<8x1xi1> to vector<8x32xi1>
    %386 = arith.select %385, %381, %324 : vector<8x32xi1>, vector<8x32xf32>
    %387 = vector.shape_cast %383 : vector<8x1xi1> to vector<8x1xi1>
    %388 = vector.broadcast %387 : vector<8x1xi1> to vector<8x32xi1>
    %389 = arith.select %388, %379, %327 : vector<8x32xi1>, vector<8x32xf32>
    %c6_i32 = arith.constant 6 : i32
    %c7_i32_65 = arith.constant 7 : i32
    %390 = arith.subi %c7_i32_65, %c6_i32 : i32
    %391 = tpu.concatenate %357, %386 in 1 : vector<8x32xf32>, vector<8x32xf32> -> vector<8x64xf32>
    %392 = arith.truncf %391 : vector<8x64xf32> to vector<8x64xbf16>
    %cst_66 = arith.constant dense<0.000000e+00> : vector<8x256xf32>
    %393 = tpu.matmul %392, %16, %cst_66 {dimension_numbers = #tpu.dot_dimension_numbers<[1], [0], [0], [1], [0, 0, 1, 1], [], []>} : vector<8x64xbf16>, vector<64x256xbf16>, vector<8x256xf32> -> vector<8x256xf32>
    %394 = vector.extract_strided_slice %393 {offsets = [0, 0], sizes = [8, 128], strides = [1, 1]} : vector<8x256xf32> to vector<8x128xf32>
    %395 = arith.index_cast %c6_i32 : i32 to index
    %c0_67 = arith.constant 0 : index
    %c0_68 = arith.constant 0 : index
    %396 = vector.load %arg10[%395, %c0_67, %c0_68] : memref<8x8x128xf32, #tpu.memory_space<vmem>>, vector<1x8x128xf32>
    %397 = vector.shape_cast %396 : vector<1x8x128xf32> to vector<8x128xf32>
    %398 = arith.addf %394, %397 : vector<8x128xf32>
    %399 = vector.extract_strided_slice %398 {offsets = [0, 0], sizes = [8, 96], strides = [1, 1]} : vector<8x128xf32> to vector<8x96xf32>
    %400 = arith.negf %399 : vector<8x96xf32>
    %401 = math.exp %400 : vector<8x96xf32>
    %cst_69 = arith.constant 1.000000e+00 : f32
    %402 = vector.broadcast %cst_69 : f32 to vector<8x96xf32>
    %403 = arith.addf %402, %401 : vector<8x96xf32>
    %404 = arith.divf %402, %403 : vector<8x96xf32>
    %405 = vector.extract_strided_slice %404 {offsets = [0, 0], sizes = [8, 32], strides = [1, 1]} : vector<8x96xf32> to vector<8x32xf32>
    %406 = vector.extract_strided_slice %404 {offsets = [0, 32], sizes = [8, 32], strides = [1, 1]} : vector<8x96xf32> to vector<8x32xf32>
    %407 = vector.extract_strided_slice %404 {offsets = [0, 64], sizes = [8, 32], strides = [1, 1]} : vector<8x96xf32> to vector<8x32xf32>
    %408 = vector.extract_strided_slice %398 {offsets = [0, 96], sizes = [8, 32], strides = [1, 1]} : vector<8x128xf32> to vector<8x32xf32>
    %409 = math.tanh %408 : vector<8x32xf32>
    %410 = arith.mulf %406, %360 : vector<8x32xf32>
    %411 = arith.mulf %405, %409 : vector<8x32xf32>
    %412 = arith.addf %410, %411 : vector<8x32xf32>
    %413 = math.tanh %412 : vector<8x32xf32>
    %414 = arith.mulf %407, %413 : vector<8x32xf32>
    %415 = vector.broadcast %c6_i32 : i32 to vector<8x1xi32>
    %416 = arith.cmpi slt, %415, %0 : vector<8x1xi32>
    %417 = vector.shape_cast %416 : vector<8x1xi1> to vector<8x1xi1>
    %418 = vector.broadcast %417 : vector<8x1xi1> to vector<8x32xi1>
    %419 = arith.select %418, %414, %357 : vector<8x32xi1>, vector<8x32xf32>
    %420 = vector.shape_cast %416 : vector<8x1xi1> to vector<8x1xi1>
    %421 = vector.broadcast %420 : vector<8x1xi1> to vector<8x32xi1>
    %422 = arith.select %421, %412, %360 : vector<8x32xi1>, vector<8x32xf32>
    %423 = vector.extract_strided_slice %393 {offsets = [0, 128], sizes = [8, 128], strides = [1, 1]} : vector<8x256xf32> to vector<8x128xf32>
    %424 = arith.index_cast %390 : i32 to index
    %c0_70 = arith.constant 0 : index
    %c0_71 = arith.constant 0 : index
    %425 = vector.load %arg11[%424, %c0_70, %c0_71] : memref<8x8x128xf32, #tpu.memory_space<vmem>>, vector<1x8x128xf32>
    %426 = vector.shape_cast %425 : vector<1x8x128xf32> to vector<8x128xf32>
    %427 = arith.addf %423, %426 : vector<8x128xf32>
    %428 = vector.extract_strided_slice %427 {offsets = [0, 0], sizes = [8, 96], strides = [1, 1]} : vector<8x128xf32> to vector<8x96xf32>
    %429 = arith.negf %428 : vector<8x96xf32>
    %430 = math.exp %429 : vector<8x96xf32>
    %cst_72 = arith.constant 1.000000e+00 : f32
    %431 = vector.broadcast %cst_72 : f32 to vector<8x96xf32>
    %432 = arith.addf %431, %430 : vector<8x96xf32>
    %433 = arith.divf %431, %432 : vector<8x96xf32>
    %434 = vector.extract_strided_slice %433 {offsets = [0, 0], sizes = [8, 32], strides = [1, 1]} : vector<8x96xf32> to vector<8x32xf32>
    %435 = vector.extract_strided_slice %433 {offsets = [0, 32], sizes = [8, 32], strides = [1, 1]} : vector<8x96xf32> to vector<8x32xf32>
    %436 = vector.extract_strided_slice %433 {offsets = [0, 64], sizes = [8, 32], strides = [1, 1]} : vector<8x96xf32> to vector<8x32xf32>
    %437 = vector.extract_strided_slice %427 {offsets = [0, 96], sizes = [8, 32], strides = [1, 1]} : vector<8x128xf32> to vector<8x32xf32>
    %438 = math.tanh %437 : vector<8x32xf32>
    %439 = arith.mulf %435, %389 : vector<8x32xf32>
    %440 = arith.mulf %434, %438 : vector<8x32xf32>
    %441 = arith.addf %439, %440 : vector<8x32xf32>
    %442 = math.tanh %441 : vector<8x32xf32>
    %443 = arith.mulf %436, %442 : vector<8x32xf32>
    %444 = vector.broadcast %390 : i32 to vector<8x1xi32>
    %445 = arith.cmpi slt, %444, %0 : vector<8x1xi32>
    %446 = vector.shape_cast %445 : vector<8x1xi1> to vector<8x1xi1>
    %447 = vector.broadcast %446 : vector<8x1xi1> to vector<8x32xi1>
    %448 = arith.select %447, %443, %386 : vector<8x32xi1>, vector<8x32xf32>
    %449 = vector.shape_cast %445 : vector<8x1xi1> to vector<8x1xi1>
    %450 = vector.broadcast %449 : vector<8x1xi1> to vector<8x32xi1>
    %451 = arith.select %450, %441, %389 : vector<8x32xi1>, vector<8x32xf32>
    %c7_i32_73 = arith.constant 7 : i32
    %c7_i32_74 = arith.constant 7 : i32
    %452 = arith.subi %c7_i32_74, %c7_i32_73 : i32
    %453 = tpu.concatenate %419, %448 in 1 : vector<8x32xf32>, vector<8x32xf32> -> vector<8x64xf32>
    %454 = arith.truncf %453 : vector<8x64xf32> to vector<8x64xbf16>
    %cst_75 = arith.constant dense<0.000000e+00> : vector<8x256xf32>
    %455 = tpu.matmul %454, %16, %cst_75 {dimension_numbers = #tpu.dot_dimension_numbers<[1], [0], [0], [1], [0, 0, 1, 1], [], []>} : vector<8x64xbf16>, vector<64x256xbf16>, vector<8x256xf32> -> vector<8x256xf32>
    %456 = vector.extract_strided_slice %455 {offsets = [0, 0], sizes = [8, 128], strides = [1, 1]} : vector<8x256xf32> to vector<8x128xf32>
    %457 = arith.index_cast %c7_i32_73 : i32 to index
    %c0_76 = arith.constant 0 : index
    %c0_77 = arith.constant 0 : index
    %458 = vector.load %arg10[%457, %c0_76, %c0_77] : memref<8x8x128xf32, #tpu.memory_space<vmem>>, vector<1x8x128xf32>
    %459 = vector.shape_cast %458 : vector<1x8x128xf32> to vector<8x128xf32>
    %460 = arith.addf %456, %459 : vector<8x128xf32>
    %461 = vector.extract_strided_slice %460 {offsets = [0, 0], sizes = [8, 96], strides = [1, 1]} : vector<8x128xf32> to vector<8x96xf32>
    %462 = arith.negf %461 : vector<8x96xf32>
    %463 = math.exp %462 : vector<8x96xf32>
    %cst_78 = arith.constant 1.000000e+00 : f32
    %464 = vector.broadcast %cst_78 : f32 to vector<8x96xf32>
    %465 = arith.addf %464, %463 : vector<8x96xf32>
    %466 = arith.divf %464, %465 : vector<8x96xf32>
    %467 = vector.extract_strided_slice %466 {offsets = [0, 0], sizes = [8, 32], strides = [1, 1]} : vector<8x96xf32> to vector<8x32xf32>
    %468 = vector.extract_strided_slice %466 {offsets = [0, 32], sizes = [8, 32], strides = [1, 1]} : vector<8x96xf32> to vector<8x32xf32>
    %469 = vector.extract_strided_slice %466 {offsets = [0, 64], sizes = [8, 32], strides = [1, 1]} : vector<8x96xf32> to vector<8x32xf32>
    %470 = vector.extract_strided_slice %460 {offsets = [0, 96], sizes = [8, 32], strides = [1, 1]} : vector<8x128xf32> to vector<8x32xf32>
    %471 = math.tanh %470 : vector<8x32xf32>
    %472 = arith.mulf %468, %422 : vector<8x32xf32>
    %473 = arith.mulf %467, %471 : vector<8x32xf32>
    %474 = arith.addf %472, %473 : vector<8x32xf32>
    %475 = math.tanh %474 : vector<8x32xf32>
    %476 = arith.mulf %469, %475 : vector<8x32xf32>
    %477 = vector.broadcast %c7_i32_73 : i32 to vector<8x1xi32>
    %478 = arith.cmpi slt, %477, %0 : vector<8x1xi32>
    %479 = vector.shape_cast %478 : vector<8x1xi1> to vector<8x1xi1>
    %480 = vector.broadcast %479 : vector<8x1xi1> to vector<8x32xi1>
    %481 = arith.select %480, %476, %419 : vector<8x32xi1>, vector<8x32xf32>
    %482 = vector.shape_cast %478 : vector<8x1xi1> to vector<8x1xi1>
    %483 = vector.broadcast %482 : vector<8x1xi1> to vector<8x32xi1>
    %484 = arith.select %483, %474, %422 : vector<8x32xi1>, vector<8x32xf32>
    %485 = vector.extract_strided_slice %455 {offsets = [0, 128], sizes = [8, 128], strides = [1, 1]} : vector<8x256xf32> to vector<8x128xf32>
    %486 = arith.index_cast %452 : i32 to index
    %c0_79 = arith.constant 0 : index
    %c0_80 = arith.constant 0 : index
    %487 = vector.load %arg11[%486, %c0_79, %c0_80] : memref<8x8x128xf32, #tpu.memory_space<vmem>>, vector<1x8x128xf32>
    %488 = vector.shape_cast %487 : vector<1x8x128xf32> to vector<8x128xf32>
    %489 = arith.addf %485, %488 : vector<8x128xf32>
    %490 = vector.extract_strided_slice %489 {offsets = [0, 0], sizes = [8, 96], strides = [1, 1]} : vector<8x128xf32> to vector<8x96xf32>
    %491 = arith.negf %490 : vector<8x96xf32>
    %492 = math.exp %491 : vector<8x96xf32>
    %cst_81 = arith.constant 1.000000e+00 : f32
    %493 = vector.broadcast %cst_81 : f32 to vector<8x96xf32>
    %494 = arith.addf %493, %492 : vector<8x96xf32>
    %495 = arith.divf %493, %494 : vector<8x96xf32>
    %496 = vector.extract_strided_slice %495 {offsets = [0, 0], sizes = [8, 32], strides = [1, 1]} : vector<8x96xf32> to vector<8x32xf32>
    %497 = vector.extract_strided_slice %495 {offsets = [0, 32], sizes = [8, 32], strides = [1, 1]} : vector<8x96xf32> to vector<8x32xf32>
    %498 = vector.extract_strided_slice %495 {offsets = [0, 64], sizes = [8, 32], strides = [1, 1]} : vector<8x96xf32> to vector<8x32xf32>
    %499 = vector.extract_strided_slice %489 {offsets = [0, 96], sizes = [8, 32], strides = [1, 1]} : vector<8x128xf32> to vector<8x32xf32>
    %500 = math.tanh %499 : vector<8x32xf32>
    %501 = arith.mulf %497, %451 : vector<8x32xf32>
    %502 = arith.mulf %496, %500 : vector<8x32xf32>
    %503 = arith.addf %501, %502 : vector<8x32xf32>
    %504 = math.tanh %503 : vector<8x32xf32>
    %505 = arith.mulf %498, %504 : vector<8x32xf32>
    %506 = vector.broadcast %452 : i32 to vector<8x1xi32>
    %507 = arith.cmpi slt, %506, %0 : vector<8x1xi32>
    %508 = vector.shape_cast %507 : vector<8x1xi1> to vector<8x1xi1>
    %509 = vector.broadcast %508 : vector<8x1xi1> to vector<8x32xi1>
    %510 = arith.select %509, %505, %448 : vector<8x32xi1>, vector<8x32xf32>
    %511 = vector.shape_cast %507 : vector<8x1xi1> to vector<8x1xi1>
    %512 = vector.broadcast %511 : vector<8x1xi1> to vector<8x32xi1>
    %513 = arith.select %512, %503, %451 : vector<8x32xi1>, vector<8x32xf32>
    %c8_i32 = arith.constant 8 : i32
    %c0_82 = arith.constant 0 : index
    %c0_83 = arith.constant 0 : index
    %514 = vector.load %arg6[%c0_82, %c0_83] : memref<1x32xf32, #tpu.memory_space<vmem>>, vector<1x32xf32>
    %515 = vector.broadcast %514 : vector<1x32xf32> to vector<8x32xf32>
    %516 = arith.mulf %481, %515 : vector<8x32xf32>
    %cst_84 = arith.constant dense<0.000000e+00> : vector<8xf32>
    %517 = vector.multi_reduction <add>, %516, %cst_84 [1] : vector<8x32xf32> to vector<8xf32>
    %518 = vector.shape_cast %517 : vector<8xf32> to vector<8x1xf32>
    %c0_85 = arith.constant 0 : index
    %c0_86 = arith.constant 0 : index
    %519 = vector.load %arg7[%c0_85, %c0_86] : memref<1x32xf32, #tpu.memory_space<vmem>>, vector<1x32xf32>
    %520 = vector.broadcast %519 : vector<1x32xf32> to vector<8x32xf32>
    %521 = arith.mulf %510, %520 : vector<8x32xf32>
    %cst_87 = arith.constant dense<0.000000e+00> : vector<8xf32>
    %522 = vector.multi_reduction <add>, %521, %cst_87 [1] : vector<8x32xf32> to vector<8xf32>
    %523 = vector.shape_cast %522 : vector<8xf32> to vector<8x1xf32>
    %524 = arith.addf %518, %523 : vector<8x1xf32>
    %c0_88 = arith.constant 0 : index
    %c0_89 = arith.constant 0 : index
    %525 = vector.load %arg8[%c0_88, %c0_89] : memref<1x1xf32, #tpu.memory_space<vmem>>, vector<1x1xf32>
    %526 = vector.broadcast %525 : vector<1x1xf32> to vector<8x1xf32>
    %527 = arith.addf %524, %526 : vector<8x1xf32>
    %c0_90 = arith.constant 0 : index
    %c0_91 = arith.constant 0 : index
    %528 = vector.load %arg9[%c0_90, %c0_91] : memref<8x1xf32, #tpu.memory_space<vmem>>, vector<8x1xf32>
    tpu.vector_store %arg9[%c0_90, %c0_91], %527 {strides = array<i32>} : memref<8x1xf32, #tpu.memory_space<vmem>>, vector<8x1xf32>,
    return
  }
  func.func @transform_0(%arg0: i32) -> (i32, i32, i32, i32) {
    %c0_i32 = arith.constant 0 : i32
    %c0_i32_0 = arith.constant 0 : i32
    %c0_i32_1 = arith.constant 0 : i32
    %c0_i32_2 = arith.constant 0 : i32
    return %arg0, %c0_i32, %c0_i32_0, %c0_i32_1 : i32, i32, i32, i32
  }
  func.func @transform_1(%arg0: i32) -> (i32, i32) {
    %c0_i32 = arith.constant 0 : i32
    %c0_i32_0 = arith.constant 0 : i32
    return %arg0, %c0_i32 : i32, i32
  }
  func.func @transform_2(%arg0: i32) -> (i32, i32) {
    %c0_i32 = arith.constant 0 : i32
    %c0_i32_0 = arith.constant 0 : i32
    %c0_i32_1 = arith.constant 0 : i32
    return %c0_i32, %c0_i32_0 : i32, i32
  }
  func.func @transform_3(%arg0: i32) -> (i32, i32) {
    %c0_i32 = arith.constant 0 : i32
    %c0_i32_0 = arith.constant 0 : i32
    %c0_i32_1 = arith.constant 0 : i32
    return %c0_i32, %c0_i32_0 : i32, i32
  }
  func.func @transform_4(%arg0: i32) -> (i32, i32) {
    %c0_i32 = arith.constant 0 : i32
    %c0_i32_0 = arith.constant 0 : i32
    %c0_i32_1 = arith.constant 0 : i32
    return %c0_i32, %c0_i32_0 : i32, i32
  }
  func.func @transform_5(%arg0: i32) -> (i32, i32) {
    %c0_i32 = arith.constant 0 : i32
    %c0_i32_0 = arith.constant 0 : i32
    %c0_i32_1 = arith.constant 0 : i32
    return %c0_i32, %c0_i32_0 : i32, i32
  }
  func.func @transform_6(%arg0: i32) -> (i32, i32) {
    %c0_i32 = arith.constant 0 : i32
    %c0_i32_0 = arith.constant 0 : i32
    %c0_i32_1 = arith.constant 0 : i32
    return %c0_i32, %c0_i32_0 : i32, i32
  }
  func.func @transform_7(%arg0: i32) -> (i32, i32) {
    %c0_i32 = arith.constant 0 : i32
    %c0_i32_0 = arith.constant 0 : i32
    %c0_i32_1 = arith.constant 0 : i32
    return %c0_i32, %c0_i32_0 : i32, i32
  }
  func.func @transform_8(%arg0: i32) -> (i32, i32) {
    %c0_i32 = arith.constant 0 : i32
    %c0_i32_0 = arith.constant 0 : i32
    return %arg0, %c0_i32 : i32, i32
  }
}

</mosaic_0001>

<llo_original>
// kernel: tpu_custom_call.1
$region0: #{tpu_custom_call.1}
  #allocation0 [shape = 'u32[]', space=smem, size = 0x4, offset = 0x4, fixed_abs, tag = 'smem constant byte address 0x4 - core index']
  #allocation1 [shape = 'u32[144,128]{1,0:T(1,128)}', space=vmem, size = 0x12000, scoped, tag = 'internal scratch']
  #allocation2 [shape = 'f32[8,8,128]{2,1,0:T(8,128)}', space=vmem, size = 0x8000, scoped, tag = 'scratch operand']
  #allocation3 [shape = 'f32[8,8,128]{2,1,0:T(8,128)}', space=vmem, size = 0x8000, scoped, tag = 'scratch operand']
  #allocation4 [shape = 'f32[1,1]{1,0:T(1,128)S(1)}', space=vmem, size = 0x200, scoped, tag = 'scoped memory for tpu_custom_call.1']
  %s0 = inlined_call_operand.hbm [shape: f32[1,8,8,64], index: 0, kind: input, shape index: {}]
  %s1 = inlined_call_operand.vmem [shape: s32[8,1], index: 1, kind: input, shape index: {}]
  %s2 = inlined_call_operand.hbm [shape: bf16[64,256], index: 2, kind: input, shape index: {}]
  %s3 = inlined_call_operand.hbm [shape: bf16[64,256], index: 3, kind: input, shape index: {}]
  %s4 = inlined_call_operand.vmem [shape: f32[1,256], index: 4, kind: input, shape index: {}]
  %s5 = inlined_call_operand.vmem [shape: f32[1,32], index: 5, kind: input, shape index: {}]
  %s6 = inlined_call_operand.vmem [shape: f32[1,32], index: 6, kind: input, shape index: {}]
  %s7 = inlined_call_operand.<no memory space> [shape: f32[1,1], index: 7, kind: input, shape index: {}]
  %s8 = inlined_call_operand.vmem [shape: f32[8,1], index: 8, kind: output, shape index: {}]
  %s9 = sld [smem:[#allocation0]]
  $region54: #{tpu_custom_call.1} parent=0
    _
  %s11 = ssub.s32 1, %s9
  %s12 = scalar_select 0, %s11, %s9
  %v13 = vstv %s7
  %14 = vst [vmem:[#allocation4] sm:$0x1] %v13
  $region1: #{tpu_custom_call.1} parent=0
    #allocation5 [shape = 'u8[32768]{0}', space=vmem, size = 0x8000, scoped, tag = 'input window, operand 0, single buffered']
    #allocation6 [shape = 's32[1]{0}', space=sflag, size = 0x4, scoped, tag = 'scoped memory for tpu_custom_call.1']
    #allocation7 [shape = 'u8[32768]{0}', space=vmem, size = 0x8000, scoped, tag = 'input window, operand 2, single buffered']
    #allocation8 [shape = 's32[1]{0}', space=sflag, size = 0x4, scoped, tag = 'scoped memory for tpu_custom_call.1']
    #allocation9 [shape = 'u8[32768]{0}', space=vmem, size = 0x8000, scoped, tag = 'input window, operand 3, single buffered']
    %15 = vsyncpa [#allocation6], 0
    %16 = vsyncpa [#allocation8], 0
    // Predicated region
    $region2: #{tpu_custom_call.1} parent=1 // pred_check
      _
    $region3: #{tpu_custom_call.1} parent=1 // pred_check_branch
      %18 = sbr.rel (0) target = $region5
    $region4: #{tpu_custom_call.1} parent=1 // pred_region
      %s20 = ssub.s32 1024, 1024
      %21 = vsyncadd [#allocation6], %s20
      %s22 = sshll.u32 [#allocation5], 4
      %s23 = int_to_ptr.vmem [resolvable:$true] %s22
      %28 = dma.hbm_to_vmem [thread:$0]  %s0, 1024, %s23, [#allocation6], 128, 128, 8
    $region5: #{tpu_custom_call.1} parent=1 // pred_fallthru
      _
    // Predicated region
    $region6: #{tpu_custom_call.1} parent=1 // pred_check
      _
    $region7: #{tpu_custom_call.1} parent=1 // pred_check_branch
      %30 = sbr.rel (0) target = $region9
    $region8: #{tpu_custom_call.1} parent=1 // pred_region
      _
    $region9: #{tpu_custom_call.1} parent=1 // pred_fallthru
      _
    // Predicated region
    $region10: #{tpu_custom_call.1} parent=1 // pred_check
      _
    $region11: #{tpu_custom_call.1} parent=1 // pred_check_branch
      %32 = sbr.rel (0) target = $region13
    $region12: #{tpu_custom_call.1} parent=1 // pred_region
      %s34 = ssub.s32 1024, 1024
      %35 = vsyncadd [#allocation8], %s34
      %s36 = sshll.u32 [#allocation7], 4
      %s37 = int_to_ptr.vmem [resolvable:$true] %s36
      %42 = dma.hbm_to_vmem [thread:$0]  %s2, 1024, %s37, [#allocation8], 128, 128, 8
    $region13: #{tpu_custom_call.1} parent=1 // pred_fallthru
      _
    // Predicated region
    $region14: #{tpu_custom_call.1} parent=1 // pred_check
      _
    $region15: #{tpu_custom_call.1} parent=1 // pred_check_branch
      %44 = sbr.rel (0) target = $region17
    $region16: #{tpu_custom_call.1} parent=1 // pred_region
      %s46 = ssub.s32 1024, 1024
      %47 = vsyncadd [#allocation8], %s46
      %s48 = sshll.u32 [#allocation9], 4
      %s49 = int_to_ptr.vmem [resolvable:$true] %s48
      %54 = dma.hbm_to_vmem [thread:$0]  %s3, 1024, %s49, [#allocation8], 128, 128, 8
    $region17: #{tpu_custom_call.1} parent=1 // pred_fallthru
      _
    // Predicated region
    $region18: #{tpu_custom_call.1} parent=1 // pred_check
      _
    $region19: #{tpu_custom_call.1} parent=1 // pred_check_branch
      %56 = sbr.rel (0) target = $region21
    $region20: #{tpu_custom_call.1} parent=1 // pred_region
      _
    $region21: #{tpu_custom_call.1} parent=1 // pred_fallthru
      _
    // Predicated region
    $region22: #{tpu_custom_call.1} parent=1 // pred_check
      _
    $region23: #{tpu_custom_call.1} parent=1 // pred_check_branch
      %58 = sbr.rel (0) target = $region25
    $region24: #{tpu_custom_call.1} parent=1 // pred_region
      _
    $region25: #{tpu_custom_call.1} parent=1 // pred_fallthru
      _
    // Predicated region
    $region26: #{tpu_custom_call.1} parent=1 // pred_check
      _
    $region27: #{tpu_custom_call.1} parent=1 // pred_check_branch
      %60 = sbr.rel (0) target = $region29
    $region28: #{tpu_custom_call.1} parent=1 // pred_region
      _
    $region29: #{tpu_custom_call.1} parent=1 // pred_fallthru
      _
    // Predicated region
    $region30: #{tpu_custom_call.1} parent=1 // pred_check
      _
    $region31: #{tpu_custom_call.1} parent=1 // pred_check_branch
      %62 = sbr.rel (0) target = $region33
    $region32: #{tpu_custom_call.1} parent=1 // pred_region
      _
    $region33: #{tpu_custom_call.1} parent=1 // pred_fallthru
      _
    // Predicated region
    $region34: #{tpu_custom_call.1} parent=1 // pred_check
      _
    $region35: #{tpu_custom_call.1} parent=1 // pred_check_branch
      %64 = sbr.rel (0) target = $region37
    $region36: #{tpu_custom_call.1} parent=1 // pred_region
      %65 = dma.done [#allocation6], 1024
    $region37: #{tpu_custom_call.1} parent=1 // pred_fallthru
      _
    // Predicated region
    $region38: #{tpu_custom_call.1} parent=1 // pred_check
      _
    $region39: #{tpu_custom_call.1} parent=1 // pred_check_branch
      %67 = sbr.rel (0) target = $region41
    $region40: #{tpu_custom_call.1} parent=1 // pred_region
      %68 = dma.done [#allocation8], 1024
    $region41: #{tpu_custom_call.1} parent=1 // pred_fallthru
      _
    // Predicated region
    $region42: #{tpu_custom_call.1} parent=1 // pred_check
      _
    $region43: #{tpu_custom_call.1} parent=1 // pred_check_branch
      %70 = sbr.rel (0) target = $region45
    $region44: #{tpu_custom_call.1} parent=1 // pred_region
      %71 = dma.done [#allocation8], 1024
    $region45: #{tpu_custom_call.1} parent=1 // pred_fallthru
      _
    %v73 = vld [vmem:[%s1] sm:$0xff]
    %v74 = vld [vmem:[#allocation5] sm:$0xff]
    %v75 = vld [vmem:[#allocation5 + $0x8] sm:$0xff]
    %v76 = vld [vmem:[#allocation5 + $0x10] sm:$0xff]
    %v77 = vld [vmem:[#allocation5 + $0x18] sm:$0xff]
    %v78 = vld [vmem:[#allocation5 + $0x20] sm:$0xff]
    %v79 = vld [vmem:[#allocation5 + $0x28] sm:$0xff]
    %v80 = vld [vmem:[#allocation5 + $0x30] sm:$0xff]
    %v81 = vld [vmem:[#allocation5 + $0x38] sm:$0xff]
    %v82 = vpack.c.bf16 %v75, %v74
    %v83 = vpack.c.bf16 %v77, %v76
    %v84 = vpack.c.bf16 %v79, %v78
    %v85 = vpack.c.bf16 %v81, %v80
    %v86 = vld [vmem:[#allocation7] sm:$0xff]
    %v87 = vld [vmem:[#allocation7 + $0x8] sm:$0xff]
    %v88 = vld [vmem:[#allocation7 + $0x10] sm:$0xff]
    %v89 = vld [vmem:[#allocation7 + $0x18] sm:$0xff]
    %v90 = vld [vmem:[#allocation7 + $0x20] sm:$0xff]
    %v91 = vld [vmem:[#allocation7 + $0x28] sm:$0xff]
    %v92 = vld [vmem:[#allocation7 + $0x30] sm:$0xff]
    %v93 = vld [vmem:[#allocation7 + $0x38] sm:$0xff]
    %v94 = vld [vmem:[%s4] sm:$0x3]
    %v96 = vlaneseq
    %v97 = vshrl.u32 %v96, 7
    %v98 = vsub.s32 0, %v97
    %v99 = vrot.slane %v94, %v98
    %v100 = vlaneseq
    %v101 = vshrl.u32 %v100, 7
    %v102 = vsub.s32 1, %v101
    %v103 = vrot.slane %v94, %v102
    %v114 = vunpack.c.l.b16 %v86
    %v115 = vunpack.c.h.b16 %v86
    %v116 = vunpack.c.l.b16 %v87
    %v117 = vunpack.c.h.b16 %v87
    %v118 = vunpack.c.l.b16 %v88
    %v119 = vunpack.c.h.b16 %v88
    %v120 = vunpack.c.l.b16 %v89
    %v121 = vunpack.c.h.b16 %v89
    %v122 = vunpack.c.l.b16 %v90
    %v123 = vunpack.c.h.b16 %v90
    %v124 = vunpack.c.l.b16 %v91
    %v125 = vunpack.c.h.b16 %v91
    %v126 = vunpack.c.l.b16 %v92
    %v127 = vunpack.c.h.b16 %v92
    %v128 = vunpack.c.l.b16 %v93
    %v129 = vunpack.c.h.b16 %v93
    %v130 = vpack.c.b16 %v116, %v114
    %v131 = vpack.c.b16 %v117, %v115
    %v132 = vpack.c.b16 %v120, %v118
    %v133 = vpack.c.b16 %v121, %v119
    %v134 = vpack.c.b16 %v124, %v122
    %v135 = vpack.c.b16 %v125, %v123
    %v136 = vpack.c.b16 %v128, %v126
    %v137 = vpack.c.b16 %v129, %v127
    %vm146 = vcmask 523264
    %v148 = vsel %vm146, %v82, 0
    %v151 = vsel %vm146, %v83, 0
    %v154 = vsel %vm146, %v84, 0
    %v157 = vsel %vm146, %v85, 0
    %159 = vmatprep.subr.bf16.mxu0 0
    %160 = vmatpush1.bf16.msra.mxu0 0
    %161 = vmatprep.subr.bf16.mxu0 0
    %162 = vmatpush1.bf16.msra.mxu0 0
    %163 = vmatprep.subr.bf16.mxu0 0
    %164 = vmatpush1.bf16.msra.mxu0 0
    %165 = vmatprep.subr.bf16.mxu0 0
    %166 = vmatpush1.bf16.msra.mxu0 0
    %167 = vmatprep.subr.bf16.mxu0 %v137
    %168 = vmatpush1.bf16.msra.mxu0 %v136
    %169 = vmatprep.subr.bf16.mxu0 %v135
    %170 = vmatpush1.bf16.msra.mxu0 %v134
    %171 = vmatprep.subr.bf16.mxu0 %v133
    %172 = vmatpush1.bf16.msra.mxu0 %v132
    %173 = vmatprep.subr.bf16.mxu0 %v131
    %174 = vmatpush1.bf16.msra.mxu0 %v130
    %175 = vmatprep.subr.bf16.mxu0 0
    %176 = vmatpush2.bf16.msra.mxu0 0
    %177 = vmatprep.subr.bf16.mxu0 0
    %178 = vmatpush2.bf16.msra.mxu0 0
    %179 = vmatprep.subr.bf16.mxu0 0
    %180 = vmatpush2.bf16.msra.mxu0 0
    %181 = vmatprep.subr.bf16.mxu0 0
    %182 = vmatpush2.bf16.msra.mxu0 0
    %183 = vmatprep.subr.bf16.mxu0 0
    %184 = vmatpush2.bf16.msra.mxu0 0
    %185 = vmatprep.subr.bf16.mxu0 0
    %186 = vmatpush2.bf16.msra.mxu0 0
    %187 = vmatprep.subr.bf16.mxu0 0
    %188 = vmatpush2.bf16.msra.mxu0 0
    %189 = vmatprep.subr.bf16.mxu0 0
    %190 = vmatpush2.bf16.msra.mxu0 0
    %191 = vmatprep.mubr.bf16.mxu0 0
    %192 = vmatmul.mubr.bf16.gmra.mxu0 %v148
    %v193 = vpop.f32.mrf.mxu0
    %v194 = vadd.f32 %v99, %v193
    %v195 = vpop.f32.mrf.mxu0
    %v196 = vadd.f32 %v103, %v195
    %v197 = vpop.f32.mrf.mxu0
    %v198 = vadd.f32 %v99, %v197
    %v199 = vpop.f32.mrf.mxu0
    %v200 = vadd.f32 %v103, %v199
    %201 = vmatprep.mubr.bf16.mxu0 0
    %202 = vmatmul.mubr.bf16.gmra.mxu0 %v151
    %v203 = vpop.f32.mrf.mxu0
    %v204 = vadd.f32 %v99, %v203
    %v205 = vpop.f32.mrf.mxu0
    %v206 = vadd.f32 %v103, %v205
    %v207 = vpop.f32.mrf.mxu0
    %v208 = vadd.f32 %v99, %v207
    %v209 = vpop.f32.mrf.mxu0
    %v210 = vadd.f32 %v103, %v209
    %211 = vmatprep.mubr.bf16.mxu0 0
    %212 = vmatmul.mubr.bf16.gmra.mxu0 %v154
    %v213 = vpop.f32.mrf.mxu0
    %v214 = vadd.f32 %v99, %v213
    %v215 = vpop.f32.mrf.mxu0
    %v216 = vadd.f32 %v103, %v215
    %v217 = vpop.f32.mrf.mxu0
    %v218 = vadd.f32 %v99, %v217
    %v219 = vpop.f32.mrf.mxu0
    %v220 = vadd.f32 %v103, %v219
    %221 = vmatprep.mubr.bf16.mxu0 0
    %222 = vmatmul.mubr.bf16.gmra.mxu0 %v157
    %v223 = vpop.f32.mrf.mxu0
    %v224 = vadd.f32 %v99, %v223
    %v225 = vpop.f32.mrf.mxu0
    %v226 = vadd.f32 %v103, %v225
    %v227 = vpop.f32.mrf.mxu0
    %v228 = vadd.f32 %v99, %v227
    %v229 = vpop.f32.mrf.mxu0
    %v230 = vadd.f32 %v103, %v229
    %231 = vdwg.mxu0
    %232 = vst [vmem:[#allocation2] sm:$0xff] %v194
    %233 = vst [vmem:[#allocation2 + $0x8] sm:$0xff] %v198
    %234 = vst [vmem:[#allocation2 + $0x10] sm:$0xff] %v204
    %235 = vst [vmem:[#allocation2 + $0x18] sm:$0xff] %v208
    %236 = vst [vmem:[#allocation2 + $0x20] sm:$0xff] %v214
    %237 = vst [vmem:[#allocation2 + $0x28] sm:$0xff] %v218
    %238 = vst [vmem:[#allocation2 + $0x30] sm:$0xff] %v224
    %239 = vst [vmem:[#allocation2 + $0x38] sm:$0xff] %v228
    %240 = vst [vmem:[#allocation3] sm:$0xff] %v196
    %241 = vst [vmem:[#allocation3 + $0x8] sm:$0xff] %v200
    %242 = vst [vmem:[#allocation3 + $0x10] sm:$0xff] %v206
    %243 = vst [vmem:[#allocation3 + $0x18] sm:$0xff] %v210
    %244 = vst [vmem:[#allocation3 + $0x20] sm:$0xff] %v216
    %245 = vst [vmem:[#allocation3 + $0x28] sm:$0xff] %v220
    %246 = vst [vmem:[#allocation3 + $0x30] sm:$0xff] %v226
    %247 = vst [vmem:[#allocation3 + $0x38] sm:$0xff] %v230
    %v248 = vld [vmem:[#allocation9] sm:$0xff]
    %v249 = vld [vmem:[#allocation9 + $0x8] sm:$0xff]
    %v250 = vld [vmem:[#allocation9 + $0x10] sm:$0xff]
    %v251 = vld [vmem:[#allocation9 + $0x18] sm:$0xff]
    %v252 = vld [vmem:[#allocation9 + $0x20] sm:$0xff]
    %v253 = vld [vmem:[#allocation9 + $0x28] sm:$0xff]
    %v254 = vld [vmem:[#allocation9 + $0x30] sm:$0xff]
    %v255 = vld [vmem:[#allocation9 + $0x38] sm:$0xff]
    %v256 = vpack.c.bf16 0.0, 0.0
    %v265 = vunpack.c.l.b16 %v248
    %v266 = vunpack.c.h.b16 %v248
    %v267 = vunpack.c.l.b16 %v249
    %v268 = vunpack.c.h.b16 %v249
    %v269 = vunpack.c.l.b16 %v250
    %v270 = vunpack.c.h.b16 %v250
    %v271 = vunpack.c.l.b16 %v251
    %v272 = vunpack.c.h.b16 %v251
    %v273 = vunpack.c.l.b16 %v252
    %v274 = vunpack.c.h.b16 %v252
    %v275 = vunpack.c.l.b16 %v253
    %v276 = vunpack.c.h.b16 %v253
    %v277 = vunpack.c.l.b16 %v254
    %v278 = vunpack.c.h.b16 %v254
    %v279 = vunpack.c.l.b16 %v255
    %v280 = vunpack.c.h.b16 %v255
    %v281 = vpack.c.b16 %v267, %v265
    %v282 = vpack.c.b16 %v268, %v266
    %v283 = vpack.c.b16 %v271, %v269
    %v284 = vpack.c.b16 %v272, %v270
    %v285 = vpack.c.b16 %v275, %v273
    %v286 = vpack.c.b16 %v276, %v274
    %v287 = vpack.c.b16 %v279, %v277
    %v288 = vpack.c.b16 %v280, %v278
    %v298 = vsel %vm146, %v256, 0
    %300 = vmatprep.subr.bf16.mxu0 0
    %301 = vmatpush1.bf16.msra.mxu0 0
    %302 = vmatprep.subr.bf16.mxu0 0
    %303 = vmatpush1.bf16.msra.mxu0 0
    %304 = vmatprep.subr.bf16.mxu0 0
    %305 = vmatpush1.bf16.msra.mxu0 0
    %306 = vmatprep.subr.bf16.mxu0 0
    %307 = vmatpush1.bf16.msra.mxu0 0
    %308 = vmatprep.subr.bf16.mxu0 %v288
    %309 = vmatpush1.bf16.msra.mxu0 %v287
    %310 = vmatprep.subr.bf16.mxu0 %v286
    %311 = vmatpush1.bf16.msra.mxu0 %v285
    %312 = vmatprep.subr.bf16.mxu0 %v284
    %313 = vmatpush1.bf16.msra.mxu0 %v283
    %314 = vmatprep.subr.bf16.mxu0 %v282
    %315 = vmatpush1.bf16.msra.mxu0 %v281
    %316 = vmatprep.subr.bf16.mxu0 0
    %317 = vmatpush2.bf16.msra.mxu0 0
    %318 = vmatprep.subr.bf16.mxu0 0
    %319 = vmatpush2.bf16.msra.mxu0 0
    %320 = vmatprep.subr.bf16.mxu0 0
    %321 = vmatpush2.bf16.msra.mxu0 0
    %322 = vmatprep.subr.bf16.mxu0 0
    %323 = vmatpush2.bf16.msra.mxu0 0
    %324 = vmatprep.subr.bf16.mxu0 0
    %325 = vmatpush2.bf16.msra.mxu0 0
    %326 = vmatprep.subr.bf16.mxu0 0
    %327 = vmatpush2.bf16.msra.mxu0 0
    %328 = vmatprep.subr.bf16.mxu0 0
    %329 = vmatpush2.bf16.msra.mxu0 0
    %330 = vmatprep.subr.bf16.mxu0 0
    %331 = vmatpush2.bf16.msra.mxu0 0
    %332 = vmatprep.mubr.bf16.mxu0 0
    %333 = vmatmul.mubr.bf16.gmra.mxu0 %v298
    %v334 = vpop.f32.mrf.mxu0
    %v335 = vadd.f32 0.0, %v334
    %v336 = vpop.f32.mrf.mxu0
    %v337 = vadd.f32 0.0, %v336
    %v338 = vpop.f32.mrf.mxu0
    %v339 = vpop.f32.mrf.mxu0
    %340 = vdwg.mxu0
    %v341 = vld [vmem:[#allocation2] sm:$0xff]
    %v342 = vadd.f32 %v335, %v341
    %v343 = vxor.u32 %v342, 2147483648
    %v344 = vmul.f32 %v343, 1.442695
    %v345 = vpow.pop %v344
    %v346 = vadd.f32 %v345, 1.0
    %v347 = vrcp.pop %v346
    %v348 = vmul.f32 1.0, %v347
    %v349 = vtanh.pop %v342
    %v350 = vmul.f32 %v348, 0.0
    %352 = vrot.lane.b32.xlu0 %v349, 32
    %v353 = vpop.permute.xlu0 %352
    %v355 = vmul.f32 %v348, %v353
    %357 = vrot.lane.b32.xlu0 %v355, 32
    %v358 = vpop.permute.xlu0 %357
    %v360 = vadd.f32 %v350, %v358
    %v361 = vtanh.pop %v360
    %363 = vrot.lane.b32.xlu0 %v361, 32
    %v364 = vpop.permute.xlu0 %363
    %v366 = vmul.f32 %v348, %v364
    %vm367 = vcmp.gt.s32.totalorder %v73, 0
    %v368 = vsel %vm367, 1, 0
    %369 = vset.pattern.permute.xlu0 0
    %370 = vperm.xlu0 %369, %v368
    %v371 = vpop.permute.xlu0 %370
    %vm372 = vcmp.eq.s32.totalorder %v371, 1
    %v373 = vsel %vm372, %v366, 0.0
    %v374 = vsel %vm372, %v360, 0.0
    %s375 = scalar_lea.vmem [#allocation3], 56
    %v376 = vld [vmem:[%s375] sm:$0xff]
    %v377 = vadd.f32 %v337, %v376
    %v378 = vxor.u32 %v377, 2147483648
    %v379 = vmul.f32 %v378, 1.442695
    %v380 = vpow.pop %v379
    %v381 = vadd.f32 %v380, 1.0
    %v382 = vrcp.pop %v381
    %v383 = vmul.f32 1.0, %v382
    %v384 = vtanh.pop %v377
    %v385 = vmul.f32 %v383, 0.0
    %387 = vrot.lane.b32.xlu0 %v384, 32
    %v388 = vpop.permute.xlu0 %387
    %v390 = vmul.f32 %v383, %v388
    %392 = vrot.lane.b32.xlu0 %v390, 32
    %v393 = vpop.permute.xlu0 %392
    %v395 = vadd.f32 %v385, %v393
    %v396 = vtanh.pop %v395
    %398 = vrot.lane.b32.xlu0 %v396, 32
    %v399 = vpop.permute.xlu0 %398
    %v401 = vmul.f32 %v383, %v399
    %vm402 = vcmp.gt.s32.totalorder %v73, 7
    %v403 = vsel %vm402, 1, 0
    %404 = vset.pattern.permute.xlu0 0
    %405 = vperm.xlu0 %404, %v403
    %v406 = vpop.permute.xlu0 %405
    %vm407 = vcmp.eq.s32.totalorder %v406, 1
    %v408 = vsel %vm407, %v401, 0.0
    %v409 = vsel %vm407, %v395, 0.0
    %411 = vrot.lane.b32.xlu0 %v373, 64
    %v412 = vpop.permute.xlu0 %411
    %415 = vrot.lane.b32.xlu0 %v408, 96
    %v416 = vpop.permute.xlu0 %415
    %vm418 = vcmask 261120
    %v419 = vsel %vm418, %v412, %v416
    %v420 = vpack.c.bf16 %v419, %v419
    %v422 = vsel %vm146, %v420, 0
    %424 = vmatprep.subr.bf16.mxu0 0
    %425 = vmatpush1.bf16.msra.mxu0 0
    %426 = vmatprep.subr.bf16.mxu0 0
    %427 = vmatpush1.bf16.msra.mxu0 0
    %428 = vmatprep.subr.bf16.mxu0 0
    %429 = vmatpush1.bf16.msra.mxu0 0
    %430 = vmatprep.subr.bf16.mxu0 0
    %431 = vmatpush1.bf16.msra.mxu0 0
    %432 = vmatprep.subr.bf16.mxu0 %v288
    %433 = vmatpush1.bf16.msra.mxu0 %v287
    %434 = vmatprep.subr.bf16.mxu0 %v286
    %435 = vmatpush1.bf16.msra.mxu0 %v285
    %436 = vmatprep.subr.bf16.mxu0 %v284
    %437 = vmatpush1.bf16.msra.mxu0 %v283
    %438 = vmatprep.subr.bf16.mxu0 %v282
    %439 = vmatpush1.bf16.msra.mxu0 %v281
    %440 = vmatprep.subr.bf16.mxu0 0
    %441 = vmatpush2.bf16.msra.mxu0 0
    %442 = vmatprep.subr.bf16.mxu0 0
    %443 = vmatpush2.bf16.msra.mxu0 0
    %444 = vmatprep.subr.bf16.mxu0 0
    %445 = vmatpush2.bf16.msra.mxu0 0
    %446 = vmatprep.subr.bf16.mxu0 0
    %447 = vmatpush2.bf16.msra.mxu0 0
    %448 = vmatprep.subr.bf16.mxu0 0
    %449 = vmatpush2.bf16.msra.mxu0 0
    %450 = vmatprep.subr.bf16.mxu0 0
    %451 = vmatpush2.bf16.msra.mxu0 0
    %452 = vmatprep.subr.bf16.mxu0 0
    %453 = vmatpush2.bf16.msra.mxu0 0
    %454 = vmatprep.subr.bf16.mxu0 0
    %455 = vmatpush2.bf16.msra.mxu0 0
    %456 = vmatprep.mubr.bf16.mxu0 0
    %457 = vmatmul.mubr.bf16.gmra.mxu0 %v422
    %v458 = vpop.f32.mrf.mxu0
    %v459 = vadd.f32 0.0, %v458
    %v460 = vpop.f32.mrf.mxu0
    %v461 = vadd.f32 0.0, %v460
    %v462 = vpop.f32.mrf.mxu0
    %v463 = vpop.f32.mrf.mxu0
    %464 = vdwg.mxu0
    %s465 = scalar_lea.vmem [#allocation2], 8
    %v466 = vld [vmem:[%s465] sm:$0xff]
    %v467 = vadd.f32 %v459, %v466
    %v468 = vxor.u32 %v467, 2147483648
    %v469 = vmul.f32 %v468, 1.442695
    %v470 = vpow.pop %v469
    %v471 = vadd.f32 %v470, 1.0
    %v472 = vrcp.pop %v471
    %v473 = vmul.f32 1.0, %v472
    %v474 = vtanh.pop %v467
    %v475 = vmul.f32 %v473, %v374
    %477 = vrot.lane.b32.xlu0 %v474, 32
    %v478 = vpop.permute.xlu0 %477
    %v480 = vmul.f32 %v473, %v478
    %482 = vrot.lane.b32.xlu0 %v480, 32
    %v483 = vpop.permute.xlu0 %482
    %v485 = vadd.f32 %v475, %v483
    %v486 = vtanh.pop %v485
    %488 = vrot.lane.b32.xlu0 %v486, 32
    %v489 = vpop.permute.xlu0 %488
    %v491 = vmul.f32 %v473, %v489
    %vm492 = vcmp.gt.s32.totalorder %v73, 1
    %v493 = vsel %vm492, 1, 0
    %494 = vset.pattern.permute.xlu0 0
    %495 = vperm.xlu0 %494, %v493
    %v496 = vpop.permute.xlu0 %495
    %vm497 = vcmp.eq.s32.totalorder %v496, 1
    %v498 = vsel %vm497, %v491, %v373
    %v499 = vsel %vm497, %v485, %v374
    %s500 = scalar_lea.vmem [#allocation3], 48
    %v501 = vld [vmem:[%s500] sm:$0xff]
    %v502 = vadd.f32 %v461, %v501
    %v503 = vxor.u32 %v502, 2147483648
    %v504 = vmul.f32 %v503, 1.442695
    %v505 = vpow.pop %v504
    %v506 = vadd.f32 %v505, 1.0
    %v507 = vrcp.pop %v506
    %v508 = vmul.f32 1.0, %v507
    %v509 = vtanh.pop %v502
    %v510 = vmul.f32 %v508, %v409
    %512 = vrot.lane.b32.xlu0 %v509, 32
    %v513 = vpop.permute.xlu0 %512
    %v515 = vmul.f32 %v508, %v513
    %517 = vrot.lane.b32.xlu0 %v515, 32
    %v518 = vpop.permute.xlu0 %517
    %v520 = vadd.f32 %v510, %v518
    %v521 = vtanh.pop %v520
    %523 = vrot.lane.b32.xlu0 %v521, 32
    %v524 = vpop.permute.xlu0 %523
    %v526 = vmul.f32 %v508, %v524
    %vm527 = vcmp.gt.s32.totalorder %v73, 6
    %v528 = vsel %vm527, 1, 0
    %529 = vset.pattern.permute.xlu0 0
    %530 = vperm.xlu0 %529, %v528
    %v531 = vpop.permute.xlu0 %530
    %vm532 = vcmp.eq.s32.totalorder %v531, 1
    %v533 = vsel %vm532, %v526, %v408
    %v534 = vsel %vm532, %v520, %v409
    %536 = vrot.lane.b32.xlu0 %v498, 64
    %v537 = vpop.permute.xlu0 %536
    %540 = vrot.lane.b32.xlu0 %v533, 96
    %v541 = vpop.permute.xlu0 %540
    %v543 = vsel %vm418, %v537, %v541
    %v544 = vpack.c.bf16 %v543, %v543
    %v546 = vsel %vm146, %v544, 0
    %548 = vmatprep.subr.bf16.mxu0 0
    %549 = vmatpush1.bf16.msra.mxu0 0
    %550 = vmatprep.subr.bf16.mxu0 0
    %551 = vmatpush1.bf16.msra.mxu0 0
    %552 = vmatprep.subr.bf16.mxu0 0
    %553 = vmatpush1.bf16.msra.mxu0 0
    %554 = vmatprep.subr.bf16.mxu0 0
    %555 = vmatpush1.bf16.msra.mxu0 0
    %556 = vmatprep.subr.bf16.mxu0 %v288
    %557 = vmatpush1.bf16.msra.mxu0 %v287
    %558 = vmatprep.subr.bf16.mxu0 %v286
    %559 = vmatpush1.bf16.msra.mxu0 %v285
    %560 = vmatprep.subr.bf16.mxu0 %v284
    %561 = vmatpush1.bf16.msra.mxu0 %v283
    %562 = vmatprep.subr.bf16.mxu0 %v282
    %563 = vmatpush1.bf16.msra.mxu0 %v281
    %564 = vmatprep.subr.bf16.mxu0 0
    %565 = vmatpush2.bf16.msra.mxu0 0
    %566 = vmatprep.subr.bf16.mxu0 0
    %567 = vmatpush2.bf16.msra.mxu0 0
    %568 = vmatprep.subr.bf16.mxu0 0
    %569 = vmatpush2.bf16.msra.mxu0 0
    %570 = vmatprep.subr.bf16.mxu0 0
    %571 = vmatpush2.bf16.msra.mxu0 0
    %572 = vmatprep.subr.bf16.mxu0 0
    %573 = vmatpush2.bf16.msra.mxu0 0
    %574 = vmatprep.subr.bf16.mxu0 0
    %575 = vmatpush2.bf16.msra.mxu0 0
    %576 = vmatprep.subr.bf16.mxu0 0
    %577 = vmatpush2.bf16.msra.mxu0 0
    %578 = vmatprep.subr.bf16.mxu0 0
    %579 = vmatpush2.bf16.msra.mxu0 0
    %580 = vmatprep.mubr.bf16.mxu0 0
    %581 = vmatmul.mubr.bf16.gmra.mxu0 %v546
    %v582 = vpop.f32.mrf.mxu0
    %v583 = vadd.f32 0.0, %v582
    %v584 = vpop.f32.mrf.mxu0
    %v585 = vadd.f32 0.0, %v584
    %v586 = vpop.f32.mrf.mxu0
    %v587 = vpop.f32.mrf.mxu0
    %588 = vdwg.mxu0
    %s589 = scalar_lea.vmem [#allocation2], 16
    %v590 = vld [vmem:[%s589] sm:$0xff]
    %v591 = vadd.f32 %v583, %v590
    %v592 = vxor.u32 %v591, 2147483648
    %v593 = vmul.f32 %v592, 1.442695
    %v594 = vpow.pop %v593
    %v595 = vadd.f32 %v594, 1.0
    %v596 = vrcp.pop %v595
    %v597 = vmul.f32 1.0, %v596
    %v598 = vtanh.pop %v591
    %v599 = vmul.f32 %v597, %v499
    %601 = vrot.lane.b32.xlu0 %v598, 32
    %v602 = vpop.permute.xlu0 %601
    %v604 = vmul.f32 %v597, %v602
    %606 = vrot.lane.b32.xlu0 %v604, 32
    %v607 = vpop.permute.xlu0 %606
    %v609 = vadd.f32 %v599, %v607
    %v610 = vtanh.pop %v609
    %612 = vrot.lane.b32.xlu0 %v610, 32
    %v613 = vpop.permute.xlu0 %612
    %v615 = vmul.f32 %v597, %v613
    %vm616 = vcmp.gt.s32.totalorder %v73, 2
    %v617 = vsel %vm616, 1, 0
    %618 = vset.pattern.permute.xlu0 0
    %619 = vperm.xlu0 %618, %v617
    %v620 = vpop.permute.xlu0 %619
    %vm621 = vcmp.eq.s32.totalorder %v620, 1
    %v622 = vsel %vm621, %v615, %v498
    %v623 = vsel %vm621, %v609, %v499
    %s624 = scalar_lea.vmem [#allocation3], 40
    %v625 = vld [vmem:[%s624] sm:$0xff]
    %v626 = vadd.f32 %v585, %v625
    %v627 = vxor.u32 %v626, 2147483648
    %v628 = vmul.f32 %v627, 1.442695
    %v629 = vpow.pop %v628
    %v630 = vadd.f32 %v629, 1.0
    %v631 = vrcp.pop %v630
    %v632 = vmul.f32 1.0, %v631
    %v633 = vtanh.pop %v626
    %v634 = vmul.f32 %v632, %v534
    %636 = vrot.lane.b32.xlu0 %v633, 32
    %v637 = vpop.permute.xlu0 %636
    %v639 = vmul.f32 %v632, %v637
    %641 = vrot.lane.b32.xlu0 %v639, 32
    %v642 = vpop.permute.xlu0 %641
    %v644 = vadd.f32 %v634, %v642
    %v645 = vtanh.pop %v644
    %647 = vrot.lane.b32.xlu0 %v645, 32
    %v648 = vpop.permute.xlu0 %647
    %v650 = vmul.f32 %v632, %v648
    %vm651 = vcmp.gt.s32.totalorder %v73, 5
    %v652 = vsel %vm651, 1, 0
    %653 = vset.pattern.permute.xlu0 0
    %654 = vperm.xlu0 %653, %v652
    %v655 = vpop.permute.xlu0 %654
    %vm656 = vcmp.eq.s32.totalorder %v655, 1
    %v657 = vsel %vm656, %v650, %v533
    %v658 = vsel %vm656, %v644, %v534
    %660 = vrot.lane.b32.xlu0 %v622, 64
    %v661 = vpop.permute.xlu0 %660
    %664 = vrot.lane.b32.xlu0 %v657, 96
    %v665 = vpop.permute.xlu0 %664
    %v667 = vsel %vm418, %v661, %v665
    %v668 = vpack.c.bf16 %v667, %v667
    %v670 = vsel %vm146, %v668, 0
    %672 = vmatprep.subr.bf16.mxu0 0
    %673 = vmatpush1.bf16.msra.mxu0 0
    %674 = vmatprep.subr.bf16.mxu0 0
    %675 = vmatpush1.bf16.msra.mxu0 0
    %676 = vmatprep.subr.bf16.mxu0 0
    %677 = vmatpush1.bf16.msra.mxu0 0
    %678 = vmatprep.subr.bf16.mxu0 0
    %679 = vmatpush1.bf16.msra.mxu0 0
    %680 = vmatprep.subr.bf16.mxu0 %v288
    %681 = vmatpush1.bf16.msra.mxu0 %v287
    %682 = vmatprep.subr.bf16.mxu0 %v286
    %683 = vmatpush1.bf16.msra.mxu0 %v285
    %684 = vmatprep.subr.bf16.mxu0 %v284
    %685 = vmatpush1.bf16.msra.mxu0 %v283
    %686 = vmatprep.subr.bf16.mxu0 %v282
    %687 = vmatpush1.bf16.msra.mxu0 %v281
    %688 = vmatprep.subr.bf16.mxu0 0
    %689 = vmatpush2.bf16.msra.mxu0 0
    %690 = vmatprep.subr.bf16.mxu0 0
    %691 = vmatpush2.bf16.msra.mxu0 0
    %692 = vmatprep.subr.bf16.mxu0 0
    %693 = vmatpush2.bf16.msra.mxu0 0
    %694 = vmatprep.subr.bf16.mxu0 0
    %695 = vmatpush2.bf16.msra.mxu0 0
    %696 = vmatprep.subr.bf16.mxu0 0
    %697 = vmatpush2.bf16.msra.mxu0 0
    %698 = vmatprep.subr.bf16.mxu0 0
    %699 = vmatpush2.bf16.msra.mxu0 0
    %700 = vmatprep.subr.bf16.mxu0 0
    %701 = vmatpush2.bf16.msra.mxu0 0
    %702 = vmatprep.subr.bf16.mxu0 0
    %703 = vmatpush2.bf16.msra.mxu0 0
    %704 = vmatprep.mubr.bf16.mxu0 0
    %705 = vmatmul.mubr.bf16.gmra.mxu0 %v670
    %v706 = vpop.f32.mrf.mxu0
    %v707 = vadd.f32 0.0, %v706
    %v708 = vpop.f32.mrf.mxu0
    %v709 = vadd.f32 0.0, %v708
    %v710 = vpop.f32.mrf.mxu0
    %v711 = vpop.f32.mrf.mxu0
    %712 = vdwg.mxu0
    %s713 = scalar_lea.vmem [#allocation2], 24
    %v714 = vld [vmem:[%s713] sm:$0xff]
    %v715 = vadd.f32 %v707, %v714
    %v716 = vxor.u32 %v715, 2147483648
    %v717 = vmul.f32 %v716, 1.442695
    %v718 = vpow.pop %v717
    %v719 = vadd.f32 %v718, 1.0
    %v720 = vrcp.pop %v719
    %v721 = vmul.f32 1.0, %v720
    %v722 = vtanh.pop %v715
    %v723 = vmul.f32 %v721, %v623
    %725 = vrot.lane.b32.xlu0 %v722, 32
    %v726 = vpop.permute.xlu0 %725
    %v728 = vmul.f32 %v721, %v726
    %730 = vrot.lane.b32.xlu0 %v728, 32
    %v731 = vpop.permute.xlu0 %730
    %v733 = vadd.f32 %v723, %v731
    %v734 = vtanh.pop %v733
    %736 = vrot.lane.b32.xlu0 %v734, 32
    %v737 = vpop.permute.xlu0 %736
    %v739 = vmul.f32 %v721, %v737
    %vm740 = vcmp.gt.s32.totalorder %v73, 3
    %v741 = vsel %vm740, 1, 0
    %742 = vset.pattern.permute.xlu0 0
    %743 = vperm.xlu0 %742, %v741
    %v744 = vpop.permute.xlu0 %743
    %vm745 = vcmp.eq.s32.totalorder %v744, 1
    %v746 = vsel %vm745, %v739, %v622
    %v747 = vsel %vm745, %v733, %v623
    %s748 = scalar_lea.vmem [#allocation3], 32
    %v749 = vld [vmem:[%s748] sm:$0xff]
    %v750 = vadd.f32 %v709, %v749
    %v751 = vxor.u32 %v750, 2147483648
    %v752 = vmul.f32 %v751, 1.442695
    %v753 = vpow.pop %v752
    %v754 = vadd.f32 %v753, 1.0
    %v755 = vrcp.pop %v754
    %v756 = vmul.f32 1.0, %v755
    %v757 = vtanh.pop %v750
    %v758 = vmul.f32 %v756, %v658
    %760 = vrot.lane.b32.xlu0 %v757, 32
    %v761 = vpop.permute.xlu0 %760
    %v763 = vmul.f32 %v756, %v761
    %765 = vrot.lane.b32.xlu0 %v763, 32
    %v766 = vpop.permute.xlu0 %765
    %v768 = vadd.f32 %v758, %v766
    %v769 = vtanh.pop %v768
    %771 = vrot.lane.b32.xlu0 %v769, 32
    %v772 = vpop.permute.xlu0 %771
    %v774 = vmul.f32 %v756, %v772
    %vm775 = vcmp.gt.s32.totalorder %v73, 4
    %v776 = vsel %vm775, 1, 0
    %777 = vset.pattern.permute.xlu0 0
    %778 = vperm.xlu0 %777, %v776
    %v779 = vpop.permute.xlu0 %778
    %vm780 = vcmp.eq.s32.totalorder %v779, 1
    %v781 = vsel %vm780, %v774, %v657
    %v782 = vsel %vm780, %v768, %v658
    %784 = vrot.lane.b32.xlu0 %v746, 64
    %v785 = vpop.permute.xlu0 %784
    %788 = vrot.lane.b32.xlu0 %v781, 96
    %v789 = vpop.permute.xlu0 %788
    %v791 = vsel %vm418, %v785, %v789
    %v792 = vpack.c.bf16 %v791, %v791
    %v794 = vsel %vm146, %v792, 0
    %796 = vmatprep.subr.bf16.mxu0 0
    %797 = vmatpush1.bf16.msra.mxu0 0
    %798 = vmatprep.subr.bf16.mxu0 0
    %799 = vmatpush1.bf16.msra.mxu0 0
    %800 = vmatprep.subr.bf16.mxu0 0
    %801 = vmatpush1.bf16.msra.mxu0 0
    %802 = vmatprep.subr.bf16.mxu0 0
    %803 = vmatpush1.bf16.msra.mxu0 0
    %804 = vmatprep.subr.bf16.mxu0 %v288
    %805 = vmatpush1.bf16.msra.mxu0 %v287
    %806 = vmatprep.subr.bf16.mxu0 %v286
    %807 = vmatpush1.bf16.msra.mxu0 %v285
    %808 = vmatprep.subr.bf16.mxu0 %v284
    %809 = vmatpush1.bf16.msra.mxu0 %v283
    %810 = vmatprep.subr.bf16.mxu0 %v282
    %811 = vmatpush1.bf16.msra.mxu0 %v281
    %812 = vmatprep.subr.bf16.mxu0 0
    %813 = vmatpush2.bf16.msra.mxu0 0
    %814 = vmatprep.subr.bf16.mxu0 0
    %815 = vmatpush2.bf16.msra.mxu0 0
    %816 = vmatprep.subr.bf16.mxu0 0
    %817 = vmatpush2.bf16.msra.mxu0 0
    %818 = vmatprep.subr.bf16.mxu0 0
    %819 = vmatpush2.bf16.msra.mxu0 0
    %820 = vmatprep.subr.bf16.mxu0 0
    %821 = vmatpush2.bf16.msra.mxu0 0
    %822 = vmatprep.subr.bf16.mxu0 0
    %823 = vmatpush2.bf16.msra.mxu0 0
    %824 = vmatprep.subr.bf16.mxu0 0
    %825 = vmatpush2.bf16.msra.mxu0 0
    %826 = vmatprep.subr.bf16.mxu0 0
    %827 = vmatpush2.bf16.msra.mxu0 0
    %828 = vmatprep.mubr.bf16.mxu0 0
    %829 = vmatmul.mubr.bf16.gmra.mxu0 %v794
    %v830 = vpop.f32.mrf.mxu0
    %v831 = vadd.f32 0.0, %v830
    %v832 = vpop.f32.mrf.mxu0
    %v833 = vadd.f32 0.0, %v832
    %v834 = vpop.f32.mrf.mxu0
    %v835 = vpop.f32.mrf.mxu0
    %836 = vdwg.mxu0
    %s837 = scalar_lea.vmem [#allocation2], 32
    %v838 = vld [vmem:[%s837] sm:$0xff]
    %v839 = vadd.f32 %v831, %v838
    %v840 = vxor.u32 %v839, 2147483648
    %v841 = vmul.f32 %v840, 1.442695
    %v842 = vpow.pop %v841
    %v843 = vadd.f32 %v842, 1.0
    %v844 = vrcp.pop %v843
    %v845 = vmul.f32 1.0, %v844
    %v846 = vtanh.pop %v839
    %v847 = vmul.f32 %v845, %v747
    %849 = vrot.lane.b32.xlu0 %v846, 32
    %v850 = vpop.permute.xlu0 %849
    %v852 = vmul.f32 %v845, %v850
    %854 = vrot.lane.b32.xlu0 %v852, 32
    %v855 = vpop.permute.xlu0 %854
    %v857 = vadd.f32 %v847, %v855
    %v858 = vtanh.pop %v857
    %860 = vrot.lane.b32.xlu0 %v858, 32
    %v861 = vpop.permute.xlu0 %860
    %v863 = vmul.f32 %v845, %v861
    %v864 = vsel %vm780, %v863, %v746
    %v865 = vsel %vm780, %v857, %v747
    %s866 = scalar_lea.vmem [#allocation3], 24
    %v867 = vld [vmem:[%s866] sm:$0xff]
    %v868 = vadd.f32 %v833, %v867
    %v869 = vxor.u32 %v868, 2147483648
    %v870 = vmul.f32 %v869, 1.442695
    %v871 = vpow.pop %v870
    %v872 = vadd.f32 %v871, 1.0
    %v873 = vrcp.pop %v872
    %v874 = vmul.f32 1.0, %v873
    %v875 = vtanh.pop %v868
    %v876 = vmul.f32 %v874, %v782
    %878 = vrot.lane.b32.xlu0 %v875, 32
    %v879 = vpop.permute.xlu0 %878
    %v881 = vmul.f32 %v874, %v879
    %883 = vrot.lane.b32.xlu0 %v881, 32
    %v884 = vpop.permute.xlu0 %883
    %v886 = vadd.f32 %v876, %v884
    %v887 = vtanh.pop %v886
    %889 = vrot.lane.b32.xlu0 %v887, 32
    %v890 = vpop.permute.xlu0 %889
    %v892 = vmul.f32 %v874, %v890
    %v893 = vsel %vm745, %v892, %v781
    %v894 = vsel %vm745, %v886, %v782
    %896 = vrot.lane.b32.xlu0 %v864, 64
    %v897 = vpop.permute.xlu0 %896
    %900 = vrot.lane.b32.xlu0 %v893, 96
    %v901 = vpop.permute.xlu0 %900
    %v903 = vsel %vm418, %v897, %v901
    %v904 = vpack.c.bf16 %v903, %v903
    %v906 = vsel %vm146, %v904, 0
    %908 = vmatprep.subr.bf16.mxu0 0
    %909 = vmatpush1.bf16.msra.mxu0 0
    %910 = vmatprep.subr.bf16.mxu0 0
    %911 = vmatpush1.bf16.msra.mxu0 0
    %912 = vmatprep.subr.bf16.mxu0 0
    %913 = vmatpush1.bf16.msra.mxu0 0
    %914 = vmatprep.subr.bf16.mxu0 0
    %915 = vmatpush1.bf16.msra.mxu0 0
    %916 = vmatprep.subr.bf16.mxu0 %v288
    %917 = vmatpush1.bf16.msra.mxu0 %v287
    %918 = vmatprep.subr.bf16.mxu0 %v286
    %919 = vmatpush1.bf16.msra.mxu0 %v285
    %920 = vmatprep.subr.bf16.mxu0 %v284
    %921 = vmatpush1.bf16.msra.mxu0 %v283
    %922 = vmatprep.subr.bf16.mxu0 %v282
    %923 = vmatpush1.bf16.msra.mxu0 %v281
    %924 = vmatprep.subr.bf16.mxu0 0
    %925 = vmatpush2.bf16.msra.mxu0 0
    %926 = vmatprep.subr.bf16.mxu0 0
    %927 = vmatpush2.bf16.msra.mxu0 0
    %928 = vmatprep.subr.bf16.mxu0 0
    %929 = vmatpush2.bf16.msra.mxu0 0
    %930 = vmatprep.subr.bf16.mxu0 0
    %931 = vmatpush2.bf16.msra.mxu0 0
    %932 = vmatprep.subr.bf16.mxu0 0
    %933 = vmatpush2.bf16.msra.mxu0 0
    %934 = vmatprep.subr.bf16.mxu0 0
    %935 = vmatpush2.bf16.msra.mxu0 0
    %936 = vmatprep.subr.bf16.mxu0 0
    %937 = vmatpush2.bf16.msra.mxu0 0
    %938 = vmatprep.subr.bf16.mxu0 0
    %939 = vmatpush2.bf16.msra.mxu0 0
    %940 = vmatprep.mubr.bf16.mxu0 0
    %941 = vmatmul.mubr.bf16.gmra.mxu0 %v906
    %v942 = vpop.f32.mrf.mxu0
    %v943 = vadd.f32 0.0, %v942
    %v944 = vpop.f32.mrf.mxu0
    %v945 = vadd.f32 0.0, %v944
    %v946 = vpop.f32.mrf.mxu0
    %v947 = vpop.f32.mrf.mxu0
    %948 = vdwg.mxu0
    %s949 = scalar_lea.vmem [#allocation2], 40
    %v950 = vld [vmem:[%s949] sm:$0xff]
    %v951 = vadd.f32 %v943, %v950
    %v952 = vxor.u32 %v951, 2147483648
    %v953 = vmul.f32 %v952, 1.442695
    %v954 = vpow.pop %v953
    %v955 = vadd.f32 %v954, 1.0
    %v956 = vrcp.pop %v955
    %v957 = vmul.f32 1.0, %v956
    %v958 = vtanh.pop %v951
    %v959 = vmul.f32 %v957, %v865
    %961 = vrot.lane.b32.xlu0 %v958, 32
    %v962 = vpop.permute.xlu0 %961
    %v964 = vmul.f32 %v957, %v962
    %966 = vrot.lane.b32.xlu0 %v964, 32
    %v967 = vpop.permute.xlu0 %966
    %v969 = vadd.f32 %v959, %v967
    %v970 = vtanh.pop %v969
    %972 = vrot.lane.b32.xlu0 %v970, 32
    %v973 = vpop.permute.xlu0 %972
    %v975 = vmul.f32 %v957, %v973
    %v976 = vsel %vm656, %v975, %v864
    %v977 = vsel %vm656, %v969, %v865
    %s978 = scalar_lea.vmem [#allocation3], 16
    %v979 = vld [vmem:[%s978] sm:$0xff]
    %v980 = vadd.f32 %v945, %v979
    %v981 = vxor.u32 %v980, 2147483648
    %v982 = vmul.f32 %v981, 1.442695
    %v983 = vpow.pop %v982
    %v984 = vadd.f32 %v983, 1.0
    %v985 = vrcp.pop %v984
    %v986 = vmul.f32 1.0, %v985
    %v987 = vtanh.pop %v980
    %v988 = vmul.f32 %v986, %v894
    %990 = vrot.lane.b32.xlu0 %v987, 32
    %v991 = vpop.permute.xlu0 %990
    %v993 = vmul.f32 %v986, %v991
    %995 = vrot.lane.b32.xlu0 %v993, 32
    %v996 = vpop.permute.xlu0 %995
    %v998 = vadd.f32 %v988, %v996
    %v999 = vtanh.pop %v998
    %1001 = vrot.lane.b32.xlu0 %v999, 32
    %v1002 = vpop.permute.xlu0 %1001
    %v1004 = vmul.f32 %v986, %v1002
    %v1005 = vsel %vm621, %v1004, %v893
    %v1006 = vsel %vm621, %v998, %v894
    %1008 = vrot.lane.b32.xlu0 %v976, 64
    %v1009 = vpop.permute.xlu0 %1008
    %1012 = vrot.lane.b32.xlu0 %v1005, 96
    %v1013 = vpop.permute.xlu0 %1012
    %v1015 = vsel %vm418, %v1009, %v1013
    %v1016 = vpack.c.bf16 %v1015, %v1015
    %v1018 = vsel %vm146, %v1016, 0
    %1020 = vmatprep.subr.bf16.mxu0 0
    %1021 = vmatpush1.bf16.msra.mxu0 0
    %1022 = vmatprep.subr.bf16.mxu0 0
    %1023 = vmatpush1.bf16.msra.mxu0 0
    %1024 = vmatprep.subr.bf16.mxu0 0
    %1025 = vmatpush1.bf16.msra.mxu0 0
    %1026 = vmatprep.subr.bf16.mxu0 0
    %1027 = vmatpush1.bf16.msra.mxu0 0
    %1028 = vmatprep.subr.bf16.mxu0 %v288
    %1029 = vmatpush1.bf16.msra.mxu0 %v287
    %1030 = vmatprep.subr.bf16.mxu0 %v286
    %1031 = vmatpush1.bf16.msra.mxu0 %v285
    %1032 = vmatprep.subr.bf16.mxu0 %v284
    %1033 = vmatpush1.bf16.msra.mxu0 %v283
    %1034 = vmatprep.subr.bf16.mxu0 %v282
    %1035 = vmatpush1.bf16.msra.mxu0 %v281
    %1036 = vmatprep.subr.bf16.mxu0 0
    %1037 = vmatpush2.bf16.msra.mxu0 0
    %1038 = vmatprep.subr.bf16.mxu0 0
    %1039 = vmatpush2.bf16.msra.mxu0 0
    %1040 = vmatprep.subr.bf16.mxu0 0
    %1041 = vmatpush2.bf16.msra.mxu0 0
    %1042 = vmatprep.subr.bf16.mxu0 0
    %1043 = vmatpush2.bf16.msra.mxu0 0
    %1044 = vmatprep.subr.bf16.mxu0 0
    %1045 = vmatpush2.bf16.msra.mxu0 0
    %1046 = vmatprep.subr.bf16.mxu0 0
    %1047 = vmatpush2.bf16.msra.mxu0 0
    %1048 = vmatprep.subr.bf16.mxu0 0
    %1049 = vmatpush2.bf16.msra.mxu0 0
    %1050 = vmatprep.subr.bf16.mxu0 0
    %1051 = vmatpush2.bf16.msra.mxu0 0
    %1052 = vmatprep.mubr.bf16.mxu0 0
    %1053 = vmatmul.mubr.bf16.gmra.mxu0 %v1018
    %v1054 = vpop.f32.mrf.mxu0
    %v1055 = vadd.f32 0.0, %v1054
    %v1056 = vpop.f32.mrf.mxu0
    %v1057 = vadd.f32 0.0, %v1056
    %v1058 = vpop.f32.mrf.mxu0
    %v1059 = vpop.f32.mrf.mxu0
    %1060 = vdwg.mxu0
    %s1061 = scalar_lea.vmem [#allocation2], 48
    %v1062 = vld [vmem:[%s1061] sm:$0xff]
    %v1063 = vadd.f32 %v1055, %v1062
    %v1064 = vxor.u32 %v1063, 2147483648
    %v1065 = vmul.f32 %v1064, 1.442695
    %v1066 = vpow.pop %v1065
    %v1067 = vadd.f32 %v1066, 1.0
    %v1068 = vrcp.pop %v1067
    %v1069 = vmul.f32 1.0, %v1068
    %v1070 = vtanh.pop %v1063
    %v1071 = vmul.f32 %v1069, %v977
    %1073 = vrot.lane.b32.xlu0 %v1070, 32
    %v1074 = vpop.permute.xlu0 %1073
    %v1076 = vmul.f32 %v1069, %v1074
    %1078 = vrot.lane.b32.xlu0 %v1076, 32
    %v1079 = vpop.permute.xlu0 %1078
    %v1081 = vadd.f32 %v1071, %v1079
    %v1082 = vtanh.pop %v1081
    %1084 = vrot.lane.b32.xlu0 %v1082, 32
    %v1085 = vpop.permute.xlu0 %1084
    %v1087 = vmul.f32 %v1069, %v1085
    %v1088 = vsel %vm532, %v1087, %v976
    %v1089 = vsel %vm532, %v1081, %v977
    %s1090 = scalar_lea.vmem [#allocation3], 8
    %v1091 = vld [vmem:[%s1090] sm:$0xff]
    %v1092 = vadd.f32 %v1057, %v1091
    %v1093 = vxor.u32 %v1092, 2147483648
    %v1094 = vmul.f32 %v1093, 1.442695
    %v1095 = vpow.pop %v1094
    %v1096 = vadd.f32 %v1095, 1.0
    %v1097 = vrcp.pop %v1096
    %v1098 = vmul.f32 1.0, %v1097
    %v1099 = vtanh.pop %v1092
    %v1100 = vmul.f32 %v1098, %v1006
    %1102 = vrot.lane.b32.xlu0 %v1099, 32
    %v1103 = vpop.permute.xlu0 %1102
    %v1105 = vmul.f32 %v1098, %v1103
    %1107 = vrot.lane.b32.xlu0 %v1105, 32
    %v1108 = vpop.permute.xlu0 %1107
    %v1110 = vadd.f32 %v1100, %v1108
    %v1111 = vtanh.pop %v1110
    %1113 = vrot.lane.b32.xlu0 %v1111, 32
    %v1114 = vpop.permute.xlu0 %1113
    %v1116 = vmul.f32 %v1098, %v1114
    %v1117 = vsel %vm497, %v1116, %v1005
    %v1118 = vsel %vm497, %v1110, %v1006
    %1120 = vrot.lane.b32.xlu0 %v1088, 64
    %v1121 = vpop.permute.xlu0 %1120
    %1124 = vrot.lane.b32.xlu0 %v1117, 96
    %v1125 = vpop.permute.xlu0 %1124
    %v1127 = vsel %vm418, %v1121, %v1125
    %v1128 = vpack.c.bf16 %v1127, %v1127
    %v1130 = vsel %vm146, %v1128, 0
    %1132 = vmatprep.subr.bf16.mxu0 0
    %1133 = vmatpush1.bf16.msra.mxu0 0
    %1134 = vmatprep.subr.bf16.mxu0 0
    %1135 = vmatpush1.bf16.msra.mxu0 0
    %1136 = vmatprep.subr.bf16.mxu0 0
    %1137 = vmatpush1.bf16.msra.mxu0 0
    %1138 = vmatprep.subr.bf16.mxu0 0
    %1139 = vmatpush1.bf16.msra.mxu0 0
    %1140 = vmatprep.subr.bf16.mxu0 %v288
    %1141 = vmatpush1.bf16.msra.mxu0 %v287
    %1142 = vmatprep.subr.bf16.mxu0 %v286
    %1143 = vmatpush1.bf16.msra.mxu0 %v285
    %1144 = vmatprep.subr.bf16.mxu0 %v284
    %1145 = vmatpush1.bf16.msra.mxu0 %v283
    %1146 = vmatprep.subr.bf16.mxu0 %v282
    %1147 = vmatpush1.bf16.msra.mxu0 %v281
    %1148 = vmatprep.subr.bf16.mxu0 0
    %1149 = vmatpush2.bf16.msra.mxu0 0
    %1150 = vmatprep.subr.bf16.mxu0 0
    %1151 = vmatpush2.bf16.msra.mxu0 0
    %1152 = vmatprep.subr.bf16.mxu0 0
    %1153 = vmatpush2.bf16.msra.mxu0 0
    %1154 = vmatprep.subr.bf16.mxu0 0
    %1155 = vmatpush2.bf16.msra.mxu0 0
    %1156 = vmatprep.subr.bf16.mxu0 0
    %1157 = vmatpush2.bf16.msra.mxu0 0
    %1158 = vmatprep.subr.bf16.mxu0 0
    %1159 = vmatpush2.bf16.msra.mxu0 0
    %1160 = vmatprep.subr.bf16.mxu0 0
    %1161 = vmatpush2.bf16.msra.mxu0 0
    %1162 = vmatprep.subr.bf16.mxu0 0
    %1163 = vmatpush2.bf16.msra.mxu0 0
    %1164 = vmatprep.mubr.bf16.mxu0 0
    %1165 = vmatmul.mubr.bf16.gmra.mxu0 %v1130
    %v1166 = vpop.f32.mrf.mxu0
    %v1167 = vadd.f32 0.0, %v1166
    %v1168 = vpop.f32.mrf.mxu0
    %v1169 = vadd.f32 0.0, %v1168
    %v1170 = vpop.f32.mrf.mxu0
    %v1171 = vpop.f32.mrf.mxu0
    %1172 = vdwg.mxu0
    %s1173 = scalar_lea.vmem [#allocation2], 56
    %v1174 = vld [vmem:[%s1173] sm:$0xff]
    %v1175 = vadd.f32 %v1167, %v1174
    %v1176 = vxor.u32 %v1175, 2147483648
    %v1177 = vmul.f32 %v1176, 1.442695
    %v1178 = vpow.pop %v1177
    %v1179 = vadd.f32 %v1178, 1.0
    %v1180 = vrcp.pop %v1179
    %v1181 = vmul.f32 1.0, %v1180
    %v1182 = vtanh.pop %v1175
    %v1183 = vmul.f32 %v1181, %v1089
    %1185 = vrot.lane.b32.xlu0 %v1182, 32
    %v1186 = vpop.permute.xlu0 %1185
    %v1188 = vmul.f32 %v1181, %v1186
    %1190 = vrot.lane.b32.xlu0 %v1188, 32
    %v1191 = vpop.permute.xlu0 %1190
    %v1193 = vadd.f32 %v1183, %v1191
    %v1194 = vtanh.pop %v1193
    %1196 = vrot.lane.b32.xlu0 %v1194, 32
    %v1197 = vpop.permute.xlu0 %1196
    %v1199 = vmul.f32 %v1181, %v1197
    %v1200 = vsel %vm407, %v1199, %v1088
    %v1201 = vld [vmem:[#allocation3] sm:$0xff]
    %v1202 = vadd.f32 %v1169, %v1201
    %v1203 = vxor.u32 %v1202, 2147483648
    %v1204 = vmul.f32 %v1203, 1.442695
    %v1205 = vpow.pop %v1204
    %v1206 = vadd.f32 %v1205, 1.0
    %v1207 = vrcp.pop %v1206
    %v1208 = vmul.f32 1.0, %v1207
    %v1209 = vtanh.pop %v1202
    %v1210 = vmul.f32 %v1208, %v1118
    %1212 = vrot.lane.b32.xlu0 %v1209, 32
    %v1213 = vpop.permute.xlu0 %1212
    %v1215 = vmul.f32 %v1208, %v1213
    %1217 = vrot.lane.b32.xlu0 %v1215, 32
    %v1218 = vpop.permute.xlu0 %1217
    %v1220 = vadd.f32 %v1210, %v1218
    %v1221 = vtanh.pop %v1220
    %1223 = vrot.lane.b32.xlu0 %v1221, 32
    %v1224 = vpop.permute.xlu0 %1223
    %v1226 = vmul.f32 %v1208, %v1224
    %v1227 = vsel %vm372, %v1226, %v1117
    %v1228 = vld [vmem:[%s5] sm:$0x1]
    %v1230 = vlaneseq
    %v1231 = vshrl.u32 %v1230, 7
    %v1232 = vsub.s32 0, %v1231
    %v1233 = vrot.slane %v1228, %v1232
    %1234 = vrot.lane.b32.xlu0 %v1233, 64
    %v1235 = vpop.permute.xlu0 %1234
    %v1237 = vmul.f32 %v1200, %v1235
    %1239 = vrot.lane.b32.xlu0 %v1237, 64
    %v1240 = vpop.permute.xlu0 %1239
    %v1242 = vsel %vm418, %v1240, 0.0
    %1243 = vadd.xlane.f32.xlu0 %v1242
    %v1244 = vpop.xlane.xlu0 %1243
    %v1245 = vld [vmem:[%s6] sm:$0x1]
    %v1247 = vlaneseq
    %v1248 = vshrl.u32 %v1247, 7
    %v1249 = vsub.s32 0, %v1248
    %v1250 = vrot.slane %v1245, %v1249
    %1251 = vrot.lane.b32.xlu0 %v1250, 64
    %v1252 = vpop.permute.xlu0 %1251
    %v1254 = vmul.f32 %v1227, %v1252
    %1256 = vrot.lane.b32.xlu0 %v1254, 64
    %v1257 = vpop.permute.xlu0 %1256
    %v1259 = vsel %vm418, %v1257, 0.0
    %1260 = vadd.xlane.f32.xlu0 %v1259
    %v1261 = vpop.xlane.xlu0 %1260
    %v1262 = vadd.f32 %v1244, %v1261
    %v1263 = vld [vmem:[#allocation4] sm:$0x1]
    %v1265 = vlaneseq
    %v1266 = vshrl.u32 %v1265, 7
    %v1267 = vsub.s32 0, %v1266
    %v1268 = vrot.slane %v1263, %v1267
    %v1270 = vadd.f32 %v1262, %v1268
    %vm1271 = vcmask 7168
    %1272 = vst.msk [vmem:[%s8] sm:$0xff] %vm1271, %v1270
    // Predicated region
    $region46: #{tpu_custom_call.1} parent=1 // pred_check
      _
    $region47: #{tpu_custom_call.1} parent=1 // pred_check_branch
      %1274 = sbr.rel (0) target = $region49
    $region48: #{tpu_custom_call.1} parent=1 // pred_region
      _
    $region49: #{tpu_custom_call.1} parent=1 // pred_fallthru
      _
    // Predicated region
    $region50: #{tpu_custom_call.1} parent=1 // pred_check
      _
    $region51: #{tpu_custom_call.1} parent=1 // pred_check_branch
      %1276 = sbr.rel (0) target = $region53
    $region52: #{tpu_custom_call.1} parent=1 // pred_region
      _
    $region53: #{tpu_custom_call.1} parent=1 // pred_fallthru
      _
    %1277 = vsyncpa [#allocation6], 1
    %1278 = vsyncpa [#allocation8], 1

</llo_original>
